<compile_context>
chip_gen: v5e
topology: v5e:2x2
jax: 0.10.0
libtpu: 0.0.40
codegen_flags: <defaults>
</compile_context>

<pallas_src>
import functools

import jax
import jax.numpy as jnp
from jax.experimental import pallas as pl
from jax.experimental.pallas import tpu as pltpu


# --------------------------------------------------------------------------- #
# Kernel: fused input projection + GRU recurrence, one time-chunk per grid step
# --------------------------------------------------------------------------- #
def gru_fused_kernel(lens_ref, x_ref, wih_ref, bih_ref, whh_ref, bhn_ref,
                     out_ref, hid_ref, h_acc, gx_scr, *, unroll):
    """One time-chunk of the GRU.

    lens_ref : (Bp, 1)  int32   sequence lengths (0 for padded batch rows)
    x_ref    : (Tc, Bp, Hp)     input chunk (matmul dtype, e.g. bf16)
    wih_ref  : (Hp, 3*Hp)       fused input weights  (gate order r, z, n)
    bih_ref  : (1, 3*Hp) f32    b_ih with b_hh folded in for r and z
    whh_ref  : (Hp, 3*Hp)       fused recurrent weights
    bhn_ref  : (1, Hp)   f32    hidden bias of the n gate (stays inside r*(.))
    out_ref  : (Tc, Bp, Hp)     per-step outputs (zero past sequence end)
    hid_ref  : (Bp, Hp)         final hidden state (resident: constant index_map)
    h_acc    : (Bp, Hp)  f32    VMEM scratch carrying h across time chunks
    gx_scr   : (Tc, Bp, 3*Hp)   VMEM scratch for this chunk's input projection
    """
    c = pl.program_id(0)
    Tc, Bp, Hp = out_ref.shape
    mm_dtype = whh_ref.dtype

    # --- 1) per-chunk hoisted input projection: one lane-dense MXU GEMM ----- #
    x2d = x_ref[...].reshape(Tc * Bp, Hp)
    gx = jnp.dot(x2d, wih_ref[...],
                 preferred_element_type=jnp.float32) + bih_ref[...]
    gx_scr[...] = gx.reshape(Tc, Bp, 3 * Hp)

    # --- carried hidden state lives in VMEM across the whole time grid ------ #
    @pl.when(c == 0)
    def _():
        h_acc[...] = jnp.zeros_like(h_acc)           # hidden=None -> zeros

    # Loop-invariant operands, hoisted (JAX does not CSE broadcasts in loops).
    bhn = bhn_ref[...]                                # (1, Hp) f32
    lens_b = jnp.broadcast_to(lens_ref[...], (Bp, Hp))  # pre-broadcast lengths
    t0 = c * Tc

    def step(t, h):
        gxt = gx_scr[t]                               # (Bp, 3*Hp) f32
        # Single fused 3-gate recurrent dot; bf16 operands, f32 accumulate.
        hh = jnp.dot(h.astype(mm_dtype), whh_ref[...],
                     preferred_element_type=jnp.float32)
        r = jax.nn.sigmoid(gxt[:, :Hp] + hh[:, :Hp])
        z = jax.nn.sigmoid(gxt[:, Hp:2 * Hp] + hh[:, Hp:2 * Hp])
        n = jnp.tanh(gxt[:, 2 * Hp:] + r * (hh[:, 2 * Hp:] + bhn))
        h_new = (1.0 - z) * n + z * h
        valid = (t0 + t) < lens_b                     # (Bp, Hp) bool, 1 VPU cmp
        h_upd = jnp.where(valid, h_new, h)            # freeze past sequence end
        out_ref[t] = jnp.where(valid, h_upd,
                               jnp.zeros_like(h_upd)).astype(out_ref.dtype)
        return h_upd

    h_last = jax.lax.fori_loop(0, Tc, step, h_acc[...], unroll=unroll)
    h_acc[...] = h_last                               # carry to next chunk
    hid_ref[...] = h_last.astype(hid_ref.dtype)       # resident output block


# --------------------------------------------------------------------------- #
# Wrapper
# --------------------------------------------------------------------------- #
def _round_up(x, m):
    return ((x + m - 1) // m) * m


def context_encoder_forward(input_seq, input_lengths, params,
                            time_chunk=None, mm_dtype=jnp.bfloat16):
    """Pallas equivalent of ContextEncoderRNN.forward (n_layers=1, hidden=None)."""
    w_ih, w_hh, b_ih, b_hh = params                   # PyTorch GRU layouts
    T, B, H = input_seq.shape
    f32 = jnp.float32
    Hp = _round_up(H, 128)                            # lane-aligned hidden
    Bp = _round_up(B, 8)                              # sublane-aligned batch
    mm_bytes = jnp.dtype(mm_dtype).itemsize
    out_dtype = input_seq.dtype
    out_bytes = jnp.dtype(out_dtype).itemsize

    # Time-chunk size: keep chunk-sized buffers (double-buffered x/out + gx
    # scratch) a few MiB so the kernel fits comfortably under v7x/v5e limits.
    if time_chunk is None:
        per_t = (2 * Bp * Hp * mm_bytes               # x chunk, double-buffered
                 + 2 * Bp * Hp * out_bytes            # out chunk, double-buffered
                 + Bp * 3 * Hp * 4)                   # gx f32 scratch
        time_chunk = max(1, (4 << 20) // per_t)
    Tc = max(1, min(int(time_chunk), T))
    n_chunks = -(-T // Tc)
    Tp = n_chunks * Tc

    # --- parameter prep (once, outside the kernel) -------------------------- #
    def fuse_pad_weight(w):                           # w: (3H, H) torch layout
        wf = jnp.zeros((Hp, 3 * Hp), f32)
        for g in range(3):                            # gate order r, z, n
            wf = wf.at[:H, g * Hp:g * Hp + H].set(w[g * H:(g + 1) * H, :].T)
        return wf.astype(mm_dtype)                    # zero-padding survives cast

    wih_f = fuse_pad_weight(w_ih)                     # (Hp, 3*Hp)
    whh_f = fuse_pad_weight(w_hh)                     # (Hp, 3*Hp)

    # Fold b_hh into b_ih for r and z; keep b_hh_n separate (inside r*(...)).
    bias_f = jnp.zeros((1, 3 * Hp), f32)
    for g in range(3):
        bg = b_ih[g * H:(g + 1) * H]
        if g < 2:
            bg = bg + b_hh[g * H:(g + 1) * H]
        bias_f = bias_f.at[0, g * Hp:g * Hp + H].set(bg)
    bhn = jnp.zeros((1, Hp), f32).at[0, :H].set(b_hh[2 * H:3 * H])

    # --- input / length prep ------------------------------------------------- #
    x_pad = (jnp.zeros((Tp, Bp, Hp), mm_dtype)
             .at[:T, :B, :H].set(input_seq.astype(mm_dtype)))
    lens = (jnp.zeros((Bp, 1), jnp.int32)
            .at[:B, 0].set(input_lengths.astype(jnp.int32)))

    cost = pl.CostEstimate(
        flops=int(4 * Tp * Bp * Hp * 3 * Hp),                 # proj + recurrence
        transcendentals=int(3 * Tp * Bp * Hp),                # 2 sigmoid + 1 tanh
        bytes_accessed=int(Tp * Bp * Hp * (mm_bytes + out_bytes)
                           + 2 * Hp * 3 * Hp * mm_bytes
                           + Bp * Hp * out_bytes),
    )

    kernel = functools.partial(gru_fused_kernel, unroll=min(Tc, 8))

    outputs_pad, hidden_pad = pl.pallas_call(
        kernel,
        out_shape=(jax.ShapeDtypeStruct((Tp, Bp, Hp), out_dtype),
                   jax.ShapeDtypeStruct((Bp, Hp), out_dtype)),
        grid_spec=pltpu.PrefetchScalarGridSpec(
            num_scalar_prefetch=0,
            grid=(n_chunks,),                                  # serial recurrence
            in_specs=[pl.BlockSpec((Bp, 1), lambda c: (0, 0)),
                      pl.BlockSpec((Tc, Bp, Hp), lambda c: (c, 0, 0)),
                      pl.BlockSpec((Hp, 3 * Hp), lambda c: (0, 0)),
                      pl.BlockSpec((1, 3 * Hp), lambda c: (0, 0)),
                      pl.BlockSpec((Hp, 3 * Hp), lambda c: (0, 0)),
                      pl.BlockSpec((1, Hp), lambda c: (0, 0))],
            out_specs=[pl.BlockSpec((Tc, Bp, Hp), lambda c: (c, 0, 0)),
                       pl.BlockSpec((Bp, Hp), lambda c: (0, 0))],
            scratch_shapes=[pltpu.VMEM((Bp, Hp), f32),         # carried hidden
                            pltpu.VMEM((Tc, Bp, 3 * Hp), f32)] # chunk gx
        ),
        compiler_params=pltpu.CompilerParams(
            dimension_semantics=("arbitrary",),
            vmem_limit_bytes=32 * 1024 * 1024),
        cost_estimate=cost,
    )(lens, x_pad, wih_f, bias_f, whh_f, bhn)

    outputs = outputs_pad[:T, :B, :H]                 # strip time/batch/lane pad
    hidden = hidden_pad[:B, :H][None]                 # (1, B, H) like nn.GRU
    return outputs, hidden


# --------------------------------------------------------------------------- #
# Parameters & pure-JAX reference
# --------------------------------------------------------------------------- #
def init_gru_params(key, hidden_size):
    """PyTorch-layout GRU params with U(-1/sqrt(H), 1/sqrt(H)) init.
    Gate order along the leading axis: r, z, n (PyTorch convention)."""
    H = hidden_size
    k = 1.0 / jnp.sqrt(jnp.float32(H))
    k_ih, k_hh, k_bi, k_bh = jax.random.split(key, 4)
    w_ih = jax.random.uniform(k_ih, (3 * H, H), jnp.float32, -k, k)
    w_hh = jax.random.uniform(k_hh, (3 * H, H), jnp.float32, -k, k)
    b_ih = jax.random.uniform(k_bi, (3 * H,), jnp.float32, -k, k)
    b_hh = jax.random.uniform(k_bh, (3 * H,), jnp.float32, -k, k)
    return w_ih, w_hh, b_ih, b_hh


def gru_reference(x, lengths, params):
    """Pure-JAX reference (lax.scan) reproducing packed-GRU semantics in f32."""
    w_ih, w_hh, b_ih, b_hh = params
    T, B, H = x.shape

    def step(h, inp):
        x_t, t = inp
        gi = x_t @ w_ih.T + b_ih
        gh = h @ w_hh.T + b_hh
        i_r, i_z, i_n = gi[:, :H], gi[:, H:2 * H], gi[:, 2 * H:]
        h_r, h_z, h_n = gh[:, :H], gh[:, H:2 * H], gh[:, 2 * H:]
        r = jax.nn.sigmoid(i_r + h_r)
        z = jax.nn.sigmoid(i_z + h_z)
        n = jnp.tanh(i_n + r * h_n)
        h_new = (1.0 - z) * n + z * h
        valid = (lengths > t)[:, None]
        h_upd = jnp.where(valid, h_new, h)
        out_t = jnp.where(valid, h_upd, 0.0)
        return h_upd, out_t

    h0 = jnp.zeros((B, H), jnp.float32)
    h_last, outs = jax.lax.scan(step, h0, (x, jnp.arange(T, dtype=jnp.int32)))
    return outs, h_last[None]


# --------------------------------------------------------------------------- #
# Demo / self-test
# --------------------------------------------------------------------------- #
if __name__ == "__main__":
    T, B, H = 8, 2, 32                                # seq=8, batch=2, hidden=32
    key = jax.random.PRNGKey(0)
    k_x, k_p = jax.random.split(key)

    input_seq = jax.random.normal(k_x, (T, B, H), jnp.float32)   # (T, B, H)
    input_lengths = jnp.array([8, 5], dtype=jnp.int32)           # sorted desc
    params = init_gru_params(k_p, H)

    ref_out, ref_hid = gru_reference(input_seq, input_lengths, params)

    # 1) f32 matmul operands: tight-tolerance check of the packed-GRU semantics
    #    (time_chunk=4 -> 2 chunks, exercising the carried-hidden grid path).
    out32, hid32 = context_encoder_forward(input_seq, input_lengths, params,
                                           time_chunk=4, mm_dtype=jnp.float32)
    out32 = jax.block_until_ready(out32)
    hid32 = jax.block_until_ready(hid32)
    assert out32.shape == (T, B, H) and hid32.shape == (1, B, H)
    assert jnp.allclose(out32, ref_out, atol=1e-4, rtol=1e-4), \
        float(jnp.max(jnp.abs(out32 - ref_out)))
    assert jnp.allclose(hid32, ref_hid, atol=1e-4, rtol=1e-4), \
        float(jnp.max(jnp.abs(hid32 - ref_hid)))

    # 2) bf16 matmul operands (production path): relaxed tolerance vs f32 ref.
    outbf, hidbf = context_encoder_forward(input_seq, input_lengths, params,
                                           time_chunk=4, mm_dtype=jnp.bfloat16)
    outbf = jax.block_until_ready(outbf)
    hidbf = jax.block_until_ready(hidbf)
    assert outbf.shape == (T, B, H) and hidbf.shape == (1, B, H)
    assert jnp.allclose(outbf, ref_out, atol=3e-2, rtol=3e-2), \
        float(jnp.max(jnp.abs(outbf - ref_out)))
    assert jnp.allclose(hidbf, ref_hid, atol=3e-2, rtol=3e-2), \
        float(jnp.max(jnp.abs(hidbf - ref_hid)))

    print("KERNEL_OK")
</pallas_src>

<mosaic_0001>
module attributes {stable_mosaic.version = 11 : i64} {
  func.func @gru_fused_kernel(%arg0: i32, %arg1: memref<8x1xi32, #tpu.memory_space<vmem>>, %arg2: memref<4x8x128xf32, #tpu.memory_space<vmem>>, %arg3: memref<128x384xf32, #tpu.memory_space<vmem>>, %arg4: memref<1x384xf32, #tpu.memory_space<vmem>>, %arg5: memref<128x384xf32, #tpu.memory_space<vmem>>, %arg6: memref<1x128xf32, #tpu.memory_space<vmem>>, %arg7: memref<4x8x128xf32, #tpu.memory_space<vmem>>, %arg8: memref<8x128xf32, #tpu.memory_space<vmem>>, %arg9: memref<8x128xf32, #tpu.memory_space<vmem>>, %arg10: memref<4x8x384xf32, #tpu.memory_space<vmem>>) attributes {dimension_semantics = [#tpu.dimension_semantics<arbitrary>], iteration_bounds = array<i64: 2>, scalar_prefetch = 0 : i64, scratch_operands = 2 : i64, tpu.core_type = #tpu.core_type<tc>, window_params = [{pipeline_mode = #tpu.pipeline_mode<synchronous>, transform_indices = @transform_0, window_bounds = array<i64: 8, 1>}, {transform_indices = @transform_1, window_bounds = array<i64: 4, 8, 128>}, {pipeline_mode = #tpu.pipeline_mode<synchronous>, transform_indices = @transform_2, window_bounds = array<i64: 128, 384>}, {pipeline_mode = #tpu.pipeline_mode<synchronous>, transform_indices = @transform_3, window_bounds = array<i64: 1, 384>}, {pipeline_mode = #tpu.pipeline_mode<synchronous>, transform_indices = @transform_4, window_bounds = array<i64: 128, 384>}, {pipeline_mode = #tpu.pipeline_mode<synchronous>, transform_indices = @transform_5, window_bounds = array<i64: 1, 128>}, {transform_indices = @transform_6, window_bounds = array<i64: 4, 8, 128>}, {pipeline_mode = #tpu.pipeline_mode<synchronous>, transform_indices = @transform_7, window_bounds = array<i64: 8, 128>}]} {
    %c0 = arith.constant 0 : index
    %c0_0 = arith.constant 0 : index
    %c0_1 = arith.constant 0 : index
    %0 = vector.load %arg2[%c0, %c0_0, %c0_1] : memref<4x8x128xf32, #tpu.memory_space<vmem>>, vector<4x8x128xf32>
    %1 = vector.shape_cast %0 : vector<4x8x128xf32> to vector<32x128xf32>
    %c0_2 = arith.constant 0 : index
    %c0_3 = arith.constant 0 : index
    %2 = vector.load %arg3[%c0_2, %c0_3] : memref<128x384xf32, #tpu.memory_space<vmem>>, vector<128x384xf32>
    %cst = arith.constant dense<0.000000e+00> : vector<32x384xf32>
    %3 = tpu.matmul %1, %2, %cst {dimension_numbers = #tpu.dot_dimension_numbers<[1], [0], [0], [1], [0, 0, 1, 1], [], []>} : vector<32x128xf32>, vector<128x384xf32>, vector<32x384xf32> -> vector<32x384xf32>
    %c0_4 = arith.constant 0 : index
    %c0_5 = arith.constant 0 : index
    %4 = vector.load %arg4[%c0_4, %c0_5] : memref<1x384xf32, #tpu.memory_space<vmem>>, vector<1x384xf32>
    %5 = vector.broadcast %4 : vector<1x384xf32> to vector<32x384xf32>
    %6 = arith.addf %3, %5 : vector<32x384xf32>
    %7 = vector.shape_cast %6 : vector<32x384xf32> to vector<4x8x384xf32>
    %c0_6 = arith.constant 0 : index
    %c0_7 = arith.constant 0 : index
    %c0_8 = arith.constant 0 : index
    %8 = vector.load %arg10[%c0_6, %c0_7, %c0_8] : memref<4x8x384xf32, #tpu.memory_space<vmem>>, vector<4x8x384xf32>
    tpu.vector_store %arg10[%c0_6, %c0_7, %c0_8], %7 {strides = array<i32>} : memref<4x8x384xf32, #tpu.memory_space<vmem>>, vector<4x8x384xf32>,
    %c0_i32 = arith.constant 0 : i32
    %9 = arith.cmpi eq, %arg0, %c0_i32 : i32
    %10 = arith.extui %9 : i1 to i32
    %c0_i32_9 = arith.constant 0 : i32
    %11 = arith.cmpi ne, %10, %c0_i32_9 : i32
    scf.if %11 {
      %cst_66 = arith.constant 0.000000e+00 : f32
      %192 = vector.broadcast %cst_66 : f32 to vector<8x128xf32>
      %c0_67 = arith.constant 0 : index
      %c0_68 = arith.constant 0 : index
      %193 = vector.load %arg9[%c0_67, %c0_68] : memref<8x128xf32, #tpu.memory_space<vmem>>, vector<8x128xf32>
      tpu.vector_store %arg9[%c0_67, %c0_68], %192 {strides = array<i32>} : memref<8x128xf32, #tpu.memory_space<vmem>>, vector<8x128xf32>,
    } else {
    }
    %c0_10 = arith.constant 0 : index
    %c0_11 = arith.constant 0 : index
    %12 = vector.load %arg6[%c0_10, %c0_11] : memref<1x128xf32, #tpu.memory_space<vmem>>, vector<1x128xf32>
    %c0_12 = arith.constant 0 : index
    %c0_13 = arith.constant 0 : index
    %13 = vector.load %arg1[%c0_12, %c0_13] : memref<8x1xi32, #tpu.memory_space<vmem>>, vector<8x1xi32>
    %14 = vector.shape_cast %13 : vector<8x1xi32> to vector<8x1xi32>
    %15 = vector.broadcast %14 : vector<8x1xi32> to vector<8x128xi32>
    %c4_i32 = arith.constant 4 : i32
    %16 = arith.muli %arg0, %c4_i32 : i32
    %c0_14 = arith.constant 0 : index
    %c0_15 = arith.constant 0 : index
    %17 = vector.load %arg9[%c0_14, %c0_15] : memref<8x128xf32, #tpu.memory_space<vmem>>, vector<8x128xf32>
    %c0_i32_16 = arith.constant 0 : i32
    %18 = arith.index_cast %c0_i32_16 : i32 to index
    %c0_17 = arith.constant 0 : index
    %c0_18 = arith.constant 0 : index
    %19 = vector.load %arg10[%18, %c0_17, %c0_18] : memref<4x8x384xf32, #tpu.memory_space<vmem>>, vector<1x8x384xf32>
    %20 = vector.shape_cast %19 : vector<1x8x384xf32> to vector<8x384xf32>
    %c0_19 = arith.constant 0 : index
    %c0_20 = arith.constant 0 : index
    %21 = vector.load %arg5[%c0_19, %c0_20] : memref<128x384xf32, #tpu.memory_space<vmem>>, vector<128x384xf32>
    %cst_21 = arith.constant dense<0.000000e+00> : vector<8x384xf32>
    %22 = tpu.matmul %17, %21, %cst_21 {dimension_numbers = #tpu.dot_dimension_numbers<[1], [0], [0], [1], [0, 0, 1, 1], [], []>} : vector<8x128xf32>, vector<128x384xf32>, vector<8x384xf32> -> vector<8x384xf32>
    %23 = vector.extract_strided_slice %20 {offsets = [0, 0], sizes = [8, 128], strides = [1, 1]} : vector<8x384xf32> to vector<8x128xf32>
    %24 = vector.extract_strided_slice %22 {offsets = [0, 0], sizes = [8, 128], strides = [1, 1]} : vector<8x384xf32> to vector<8x128xf32>
    %25 = arith.addf %23, %24 : vector<8x128xf32>
    %26 = arith.negf %25 : vector<8x128xf32>
    %27 = math.exp %26 : vector<8x128xf32>
    %cst_22 = arith.constant 1.000000e+00 : f32
    %28 = vector.broadcast %cst_22 : f32 to vector<8x128xf32>
    %29 = arith.addf %28, %27 : vector<8x128xf32>
    %30 = arith.divf %28, %29 : vector<8x128xf32>
    %31 = vector.extract_strided_slice %20 {offsets = [0, 128], sizes = [8, 128], strides = [1, 1]} : vector<8x384xf32> to vector<8x128xf32>
    %32 = vector.extract_strided_slice %22 {offsets = [0, 128], sizes = [8, 128], strides = [1, 1]} : vector<8x384xf32> to vector<8x128xf32>
    %33 = arith.addf %31, %32 : vector<8x128xf32>
    %34 = arith.negf %33 : vector<8x128xf32>
    %35 = math.exp %34 : vector<8x128xf32>
    %cst_23 = arith.constant 1.000000e+00 : f32
    %36 = vector.broadcast %cst_23 : f32 to vector<8x128xf32>
    %37 = arith.addf %36, %35 : vector<8x128xf32>
    %38 = arith.divf %36, %37 : vector<8x128xf32>
    %39 = vector.extract_strided_slice %20 {offsets = [0, 256], sizes = [8, 128], strides = [1, 1]} : vector<8x384xf32> to vector<8x128xf32>
    %40 = vector.extract_strided_slice %22 {offsets = [0, 256], sizes = [8, 128], strides = [1, 1]} : vector<8x384xf32> to vector<8x128xf32>
    %41 = vector.broadcast %12 : vector<1x128xf32> to vector<8x128xf32>
    %42 = arith.addf %40, %41 : vector<8x128xf32>
    %43 = arith.mulf %30, %42 : vector<8x128xf32>
    %44 = arith.addf %39, %43 : vector<8x128xf32>
    %45 = math.tanh %44 : vector<8x128xf32>
    %cst_24 = arith.constant 1.000000e+00 : f32
    %46 = vector.broadcast %cst_24 : f32 to vector<8x128xf32>
    %47 = arith.subf %46, %38 : vector<8x128xf32>
    %48 = arith.mulf %47, %45 : vector<8x128xf32>
    %49 = arith.mulf %38, %17 : vector<8x128xf32>
    %50 = arith.addf %48, %49 : vector<8x128xf32>
    %51 = arith.addi %16, %c0_i32_16 : i32
    %52 = vector.broadcast %51 : i32 to vector<8x128xi32>
    %53 = arith.cmpi slt, %52, %15 : vector<8x128xi32>
    %54 = arith.select %53, %50, %17 : vector<8x128xi1>, vector<8x128xf32>
    %cst_25 = arith.constant 0.000000e+00 : f32
    %55 = vector.broadcast %cst_25 : f32 to vector<8x128xf32>
    %56 = arith.select %53, %54, %55 : vector<8x128xi1>, vector<8x128xf32>
    %57 = arith.index_cast %c0_i32_16 : i32 to index
    %c0_26 = arith.constant 0 : index
    %c0_27 = arith.constant 0 : index
    %58 = vector.load %arg7[%57, %c0_26, %c0_27] : memref<4x8x128xf32, #tpu.memory_space<vmem>>, vector<1x8x128xf32>
    %59 = vector.shape_cast %58 : vector<1x8x128xf32> to vector<8x128xf32>
    %60 = vector.shape_cast %56 : vector<8x128xf32> to vector<1x8x128xf32>
    tpu.vector_store %arg7[%57, %c0_26, %c0_27], %60 {strides = array<i32>} : memref<4x8x128xf32, #tpu.memory_space<vmem>>, vector<1x8x128xf32>,
    %c1_i32 = arith.constant 1 : i32
    %61 = arith.index_cast %c1_i32 : i32 to index
    %c0_28 = arith.constant 0 : index
    %c0_29 = arith.constant 0 : index
    %62 = vector.load %arg10[%61, %c0_28, %c0_29] : memref<4x8x384xf32, #tpu.memory_space<vmem>>, vector<1x8x384xf32>
    %63 = vector.shape_cast %62 : vector<1x8x384xf32> to vector<8x384xf32>
    %c0_30 = arith.constant 0 : index
    %c0_31 = arith.constant 0 : index
    %64 = vector.load %arg5[%c0_30, %c0_31] : memref<128x384xf32, #tpu.memory_space<vmem>>, vector<128x384xf32>
    %cst_32 = arith.constant dense<0.000000e+00> : vector<8x384xf32>
    %65 = tpu.matmul %54, %64, %cst_32 {dimension_numbers = #tpu.dot_dimension_numbers<[1], [0], [0], [1], [0, 0, 1, 1], [], []>} : vector<8x128xf32>, vector<128x384xf32>, vector<8x384xf32> -> vector<8x384xf32>
    %66 = vector.extract_strided_slice %63 {offsets = [0, 0], sizes = [8, 128], strides = [1, 1]} : vector<8x384xf32> to vector<8x128xf32>
    %67 = vector.extract_strided_slice %65 {offsets = [0, 0], sizes = [8, 128], strides = [1, 1]} : vector<8x384xf32> to vector<8x128xf32>
    %68 = arith.addf %66, %67 : vector<8x128xf32>
    %69 = arith.negf %68 : vector<8x128xf32>
    %70 = math.exp %69 : vector<8x128xf32>
    %cst_33 = arith.constant 1.000000e+00 : f32
    %71 = vector.broadcast %cst_33 : f32 to vector<8x128xf32>
    %72 = arith.addf %71, %70 : vector<8x128xf32>
    %73 = arith.divf %71, %72 : vector<8x128xf32>
    %74 = vector.extract_strided_slice %63 {offsets = [0, 128], sizes = [8, 128], strides = [1, 1]} : vector<8x384xf32> to vector<8x128xf32>
    %75 = vector.extract_strided_slice %65 {offsets = [0, 128], sizes = [8, 128], strides = [1, 1]} : vector<8x384xf32> to vector<8x128xf32>
    %76 = arith.addf %74, %75 : vector<8x128xf32>
    %77 = arith.negf %76 : vector<8x128xf32>
    %78 = math.exp %77 : vector<8x128xf32>
    %cst_34 = arith.constant 1.000000e+00 : f32
    %79 = vector.broadcast %cst_34 : f32 to vector<8x128xf32>
    %80 = arith.addf %79, %78 : vector<8x128xf32>
    %81 = arith.divf %79, %80 : vector<8x128xf32>
    %82 = vector.extract_strided_slice %63 {offsets = [0, 256], sizes = [8, 128], strides = [1, 1]} : vector<8x384xf32> to vector<8x128xf32>
    %83 = vector.extract_strided_slice %65 {offsets = [0, 256], sizes = [8, 128], strides = [1, 1]} : vector<8x384xf32> to vector<8x128xf32>
    %84 = vector.broadcast %12 : vector<1x128xf32> to vector<8x128xf32>
    %85 = arith.addf %83, %84 : vector<8x128xf32>
    %86 = arith.mulf %73, %85 : vector<8x128xf32>
    %87 = arith.addf %82, %86 : vector<8x128xf32>
    %88 = math.tanh %87 : vector<8x128xf32>
    %cst_35 = arith.constant 1.000000e+00 : f32
    %89 = vector.broadcast %cst_35 : f32 to vector<8x128xf32>
    %90 = arith.subf %89, %81 : vector<8x128xf32>
    %91 = arith.mulf %90, %88 : vector<8x128xf32>
    %92 = arith.mulf %81, %54 : vector<8x128xf32>
    %93 = arith.addf %91, %92 : vector<8x128xf32>
    %94 = arith.addi %16, %c1_i32 : i32
    %95 = vector.broadcast %94 : i32 to vector<8x128xi32>
    %96 = arith.cmpi slt, %95, %15 : vector<8x128xi32>
    %97 = arith.select %96, %93, %54 : vector<8x128xi1>, vector<8x128xf32>
    %cst_36 = arith.constant 0.000000e+00 : f32
    %98 = vector.broadcast %cst_36 : f32 to vector<8x128xf32>
    %99 = arith.select %96, %97, %98 : vector<8x128xi1>, vector<8x128xf32>
    %100 = arith.index_cast %c1_i32 : i32 to index
    %c0_37 = arith.constant 0 : index
    %c0_38 = arith.constant 0 : index
    %101 = vector.load %arg7[%100, %c0_37, %c0_38] : memref<4x8x128xf32, #tpu.memory_space<vmem>>, vector<1x8x128xf32>
    %102 = vector.shape_cast %101 : vector<1x8x128xf32> to vector<8x128xf32>
    %103 = vector.shape_cast %99 : vector<8x128xf32> to vector<1x8x128xf32>
    tpu.vector_store %arg7[%100, %c0_37, %c0_38], %103 {strides = array<i32>} : memref<4x8x128xf32, #tpu.memory_space<vmem>>, vector<1x8x128xf32>,
    %c2_i32 = arith.constant 2 : i32
    %104 = arith.index_cast %c2_i32 : i32 to index
    %c0_39 = arith.constant 0 : index
    %c0_40 = arith.constant 0 : index
    %105 = vector.load %arg10[%104, %c0_39, %c0_40] : memref<4x8x384xf32, #tpu.memory_space<vmem>>, vector<1x8x384xf32>
    %106 = vector.shape_cast %105 : vector<1x8x384xf32> to vector<8x384xf32>
    %c0_41 = arith.constant 0 : index
    %c0_42 = arith.constant 0 : index
    %107 = vector.load %arg5[%c0_41, %c0_42] : memref<128x384xf32, #tpu.memory_space<vmem>>, vector<128x384xf32>
    %cst_43 = arith.constant dense<0.000000e+00> : vector<8x384xf32>
    %108 = tpu.matmul %97, %107, %cst_43 {dimension_numbers = #tpu.dot_dimension_numbers<[1], [0], [0], [1], [0, 0, 1, 1], [], []>} : vector<8x128xf32>, vector<128x384xf32>, vector<8x384xf32> -> vector<8x384xf32>
    %109 = vector.extract_strided_slice %106 {offsets = [0, 0], sizes = [8, 128], strides = [1, 1]} : vector<8x384xf32> to vector<8x128xf32>
    %110 = vector.extract_strided_slice %108 {offsets = [0, 0], sizes = [8, 128], strides = [1, 1]} : vector<8x384xf32> to vector<8x128xf32>
    %111 = arith.addf %109, %110 : vector<8x128xf32>
    %112 = arith.negf %111 : vector<8x128xf32>
    %113 = math.exp %112 : vector<8x128xf32>
    %cst_44 = arith.constant 1.000000e+00 : f32
    %114 = vector.broadcast %cst_44 : f32 to vector<8x128xf32>
    %115 = arith.addf %114, %113 : vector<8x128xf32>
    %116 = arith.divf %114, %115 : vector<8x128xf32>
    %117 = vector.extract_strided_slice %106 {offsets = [0, 128], sizes = [8, 128], strides = [1, 1]} : vector<8x384xf32> to vector<8x128xf32>
    %118 = vector.extract_strided_slice %108 {offsets = [0, 128], sizes = [8, 128], strides = [1, 1]} : vector<8x384xf32> to vector<8x128xf32>
    %119 = arith.addf %117, %118 : vector<8x128xf32>
    %120 = arith.negf %119 : vector<8x128xf32>
    %121 = math.exp %120 : vector<8x128xf32>
    %cst_45 = arith.constant 1.000000e+00 : f32
    %122 = vector.broadcast %cst_45 : f32 to vector<8x128xf32>
    %123 = arith.addf %122, %121 : vector<8x128xf32>
    %124 = arith.divf %122, %123 : vector<8x128xf32>
    %125 = vector.extract_strided_slice %106 {offsets = [0, 256], sizes = [8, 128], strides = [1, 1]} : vector<8x384xf32> to vector<8x128xf32>
    %126 = vector.extract_strided_slice %108 {offsets = [0, 256], sizes = [8, 128], strides = [1, 1]} : vector<8x384xf32> to vector<8x128xf32>
    %127 = vector.broadcast %12 : vector<1x128xf32> to vector<8x128xf32>
    %128 = arith.addf %126, %127 : vector<8x128xf32>
    %129 = arith.mulf %116, %128 : vector<8x128xf32>
    %130 = arith.addf %125, %129 : vector<8x128xf32>
    %131 = math.tanh %130 : vector<8x128xf32>
    %cst_46 = arith.constant 1.000000e+00 : f32
    %132 = vector.broadcast %cst_46 : f32 to vector<8x128xf32>
    %133 = arith.subf %132, %124 : vector<8x128xf32>
    %134 = arith.mulf %133, %131 : vector<8x128xf32>
    %135 = arith.mulf %124, %97 : vector<8x128xf32>
    %136 = arith.addf %134, %135 : vector<8x128xf32>
    %137 = arith.addi %16, %c2_i32 : i32
    %138 = vector.broadcast %137 : i32 to vector<8x128xi32>
    %139 = arith.cmpi slt, %138, %15 : vector<8x128xi32>
    %140 = arith.select %139, %136, %97 : vector<8x128xi1>, vector<8x128xf32>
    %cst_47 = arith.constant 0.000000e+00 : f32
    %141 = vector.broadcast %cst_47 : f32 to vector<8x128xf32>
    %142 = arith.select %139, %140, %141 : vector<8x128xi1>, vector<8x128xf32>
    %143 = arith.index_cast %c2_i32 : i32 to index
    %c0_48 = arith.constant 0 : index
    %c0_49 = arith.constant 0 : index
    %144 = vector.load %arg7[%143, %c0_48, %c0_49] : memref<4x8x128xf32, #tpu.memory_space<vmem>>, vector<1x8x128xf32>
    %145 = vector.shape_cast %144 : vector<1x8x128xf32> to vector<8x128xf32>
    %146 = vector.shape_cast %142 : vector<8x128xf32> to vector<1x8x128xf32>
    tpu.vector_store %arg7[%143, %c0_48, %c0_49], %146 {strides = array<i32>} : memref<4x8x128xf32, #tpu.memory_space<vmem>>, vector<1x8x128xf32>,
    %c3_i32 = arith.constant 3 : i32
    %147 = arith.index_cast %c3_i32 : i32 to index
    %c0_50 = arith.constant 0 : index
    %c0_51 = arith.constant 0 : index
    %148 = vector.load %arg10[%147, %c0_50, %c0_51] : memref<4x8x384xf32, #tpu.memory_space<vmem>>, vector<1x8x384xf32>
    %149 = vector.shape_cast %148 : vector<1x8x384xf32> to vector<8x384xf32>
    %c0_52 = arith.constant 0 : index
    %c0_53 = arith.constant 0 : index
    %150 = vector.load %arg5[%c0_52, %c0_53] : memref<128x384xf32, #tpu.memory_space<vmem>>, vector<128x384xf32>
    %cst_54 = arith.constant dense<0.000000e+00> : vector<8x384xf32>
    %151 = tpu.matmul %140, %150, %cst_54 {dimension_numbers = #tpu.dot_dimension_numbers<[1], [0], [0], [1], [0, 0, 1, 1], [], []>} : vector<8x128xf32>, vector<128x384xf32>, vector<8x384xf32> -> vector<8x384xf32>
    %152 = vector.extract_strided_slice %149 {offsets = [0, 0], sizes = [8, 128], strides = [1, 1]} : vector<8x384xf32> to vector<8x128xf32>
    %153 = vector.extract_strided_slice %151 {offsets = [0, 0], sizes = [8, 128], strides = [1, 1]} : vector<8x384xf32> to vector<8x128xf32>
    %154 = arith.addf %152, %153 : vector<8x128xf32>
    %155 = arith.negf %154 : vector<8x128xf32>
    %156 = math.exp %155 : vector<8x128xf32>
    %cst_55 = arith.constant 1.000000e+00 : f32
    %157 = vector.broadcast %cst_55 : f32 to vector<8x128xf32>
    %158 = arith.addf %157, %156 : vector<8x128xf32>
    %159 = arith.divf %157, %158 : vector<8x128xf32>
    %160 = vector.extract_strided_slice %149 {offsets = [0, 128], sizes = [8, 128], strides = [1, 1]} : vector<8x384xf32> to vector<8x128xf32>
    %161 = vector.extract_strided_slice %151 {offsets = [0, 128], sizes = [8, 128], strides = [1, 1]} : vector<8x384xf32> to vector<8x128xf32>
    %162 = arith.addf %160, %161 : vector<8x128xf32>
    %163 = arith.negf %162 : vector<8x128xf32>
    %164 = math.exp %163 : vector<8x128xf32>
    %cst_56 = arith.constant 1.000000e+00 : f32
    %165 = vector.broadcast %cst_56 : f32 to vector<8x128xf32>
    %166 = arith.addf %165, %164 : vector<8x128xf32>
    %167 = arith.divf %165, %166 : vector<8x128xf32>
    %168 = vector.extract_strided_slice %149 {offsets = [0, 256], sizes = [8, 128], strides = [1, 1]} : vector<8x384xf32> to vector<8x128xf32>
    %169 = vector.extract_strided_slice %151 {offsets = [0, 256], sizes = [8, 128], strides = [1, 1]} : vector<8x384xf32> to vector<8x128xf32>
    %170 = vector.broadcast %12 : vector<1x128xf32> to vector<8x128xf32>
    %171 = arith.addf %169, %170 : vector<8x128xf32>
    %172 = arith.mulf %159, %171 : vector<8x128xf32>
    %173 = arith.addf %168, %172 : vector<8x128xf32>
    %174 = math.tanh %173 : vector<8x128xf32>
    %cst_57 = arith.constant 1.000000e+00 : f32
    %175 = vector.broadcast %cst_57 : f32 to vector<8x128xf32>
    %176 = arith.subf %175, %167 : vector<8x128xf32>
    %177 = arith.mulf %176, %174 : vector<8x128xf32>
    %178 = arith.mulf %167, %140 : vector<8x128xf32>
    %179 = arith.addf %177, %178 : vector<8x128xf32>
    %180 = arith.addi %16, %c3_i32 : i32
    %181 = vector.broadcast %180 : i32 to vector<8x128xi32>
    %182 = arith.cmpi slt, %181, %15 : vector<8x128xi32>
    %183 = arith.select %182, %179, %140 : vector<8x128xi1>, vector<8x128xf32>
    %cst_58 = arith.constant 0.000000e+00 : f32
    %184 = vector.broadcast %cst_58 : f32 to vector<8x128xf32>
    %185 = arith.select %182, %183, %184 : vector<8x128xi1>, vector<8x128xf32>
    %186 = arith.index_cast %c3_i32 : i32 to index
    %c0_59 = arith.constant 0 : index
    %c0_60 = arith.constant 0 : index
    %187 = vector.load %arg7[%186, %c0_59, %c0_60] : memref<4x8x128xf32, #tpu.memory_space<vmem>>, vector<1x8x128xf32>
    %188 = vector.shape_cast %187 : vector<1x8x128xf32> to vector<8x128xf32>
    %189 = vector.shape_cast %185 : vector<8x128xf32> to vector<1x8x128xf32>
    tpu.vector_store %arg7[%186, %c0_59, %c0_60], %189 {strides = array<i32>} : memref<4x8x128xf32, #tpu.memory_space<vmem>>, vector<1x8x128xf32>,
    %c4_i32_61 = arith.constant 4 : i32
    %c0_62 = arith.constant 0 : index
    %c0_63 = arith.constant 0 : index
    %190 = vector.load %arg9[%c0_62, %c0_63] : memref<8x128xf32, #tpu.memory_space<vmem>>, vector<8x128xf32>
    tpu.vector_store %arg9[%c0_62, %c0_63], %183 {strides = array<i32>} : memref<8x128xf32, #tpu.memory_space<vmem>>, vector<8x128xf32>,
    %c0_64 = arith.constant 0 : index
    %c0_65 = arith.constant 0 : index
    %191 = vector.load %arg8[%c0_64, %c0_65] : memref<8x128xf32, #tpu.memory_space<vmem>>, vector<8x128xf32>
    tpu.vector_store %arg8[%c0_64, %c0_65], %183 {strides = array<i32>} : memref<8x128xf32, #tpu.memory_space<vmem>>, vector<8x128xf32>,
    return
  }
  func.func @transform_0(%arg0: i32) -> (i32, i32) {
    %c0_i32 = arith.constant 0 : i32
    %c0_i32_0 = arith.constant 0 : i32
    %c0_i32_1 = arith.constant 0 : i32
    return %c0_i32, %c0_i32_0 : i32, i32
  }
  func.func @transform_1(%arg0: i32) -> (i32, i32, i32) {
    %c0_i32 = arith.constant 0 : i32
    %c0_i32_0 = arith.constant 0 : i32
    %c0_i32_1 = arith.constant 0 : i32
    return %arg0, %c0_i32, %c0_i32_0 : i32, i32, i32
  }
  func.func @transform_2(%arg0: i32) -> (i32, i32) {
    %c0_i32 = arith.constant 0 : i32
    %c0_i32_0 = arith.constant 0 : i32
    %c0_i32_1 = arith.constant 0 : i32
    return %c0_i32, %c0_i32_0 : i32, i32
  }
  func.func @transform_3(%arg0: i32) -> (i32, i32) {
    %c0_i32 = arith.constant 0 : i32
    %c0_i32_0 = arith.constant 0 : i32
    %c0_i32_1 = arith.constant 0 : i32
    return %c0_i32, %c0_i32_0 : i32, i32
  }
  func.func @transform_4(%arg0: i32) -> (i32, i32) {
    %c0_i32 = arith.constant 0 : i32
    %c0_i32_0 = arith.constant 0 : i32
    %c0_i32_1 = arith.constant 0 : i32
    return %c0_i32, %c0_i32_0 : i32, i32
  }
  func.func @transform_5(%arg0: i32) -> (i32, i32) {
    %c0_i32 = arith.constant 0 : i32
    %c0_i32_0 = arith.constant 0 : i32
    %c0_i32_1 = arith.constant 0 : i32
    return %c0_i32, %c0_i32_0 : i32, i32
  }
  func.func @transform_6(%arg0: i32) -> (i32, i32, i32) {
    %c0_i32 = arith.constant 0 : i32
    %c0_i32_0 = arith.constant 0 : i32
    %c0_i32_1 = arith.constant 0 : i32
    return %arg0, %c0_i32, %c0_i32_0 : i32, i32, i32
  }
  func.func @transform_7(%arg0: i32) -> (i32, i32) {
    %c0_i32 = arith.constant 0 : i32
    %c0_i32_0 = arith.constant 0 : i32
    %c0_i32_1 = arith.constant 0 : i32
    return %c0_i32, %c0_i32_0 : i32, i32
  }
}

</mosaic_0001>

<llo_original>
// kernel: tpu_custom_call.1
$region0: #{tpu_custom_call.1}
  #allocation0 [shape = 'u32[]', space=smem, size = 0x4, offset = 0x4, fixed_abs, tag = 'smem constant byte address 0x4 - core index']
  #allocation1 [shape = 'u32[72,128]{1,0:T(1,128)}', space=vmem, size = 0x9000, scoped, tag = 'internal scratch']
  #allocation2 [shape = 'f32[8,128]{1,0:T(8,128)}', space=vmem, size = 0x1000, scoped, tag = 'scratch operand']
  #allocation3 [shape = 'f32[4,8,384]{2,1,0:T(8,128)}', space=vmem, size = 0xc000, scoped, tag = 'scratch operand']
  %s0 = inlined_call_operand.vmem [shape: s32[8,1], index: 0, kind: input, shape index: {}]
  %s1 = inlined_call_operand.hbm [shape: f32[8,8,128], index: 1, kind: input, shape index: {}]
  %s2 = inlined_call_operand.hbm [shape: f32[128,384], index: 2, kind: input, shape index: {}]
  %s3 = inlined_call_operand.vmem [shape: f32[1,384], index: 3, kind: input, shape index: {}]
  %s4 = inlined_call_operand.hbm [shape: f32[128,384], index: 4, kind: input, shape index: {}]
  %s5 = inlined_call_operand.vmem [shape: f32[1,128], index: 5, kind: input, shape index: {}]
  %s6 = inlined_call_operand.hbm [shape: f32[8,8,128], index: 6, kind: output, shape index: {0}]
  %s7 = inlined_call_operand.hbm [shape: f32[8,128], index: 7, kind: output, shape index: {1}]
  %8 = xla_tuple %s6, %s7
  %s9 = sld [smem:[#allocation0]]
  $region81: #{tpu_custom_call.1} parent=0
    _
  %s11 = ssub.s32 1, %s9
  %s12 = scalar_select 0, %s11, %s9
  $region1: #{tpu_custom_call.1} parent=0
    #allocation4 [shape = 'u8[32768]{0}', space=vmem, size = 0x8000, scoped, tag = 'input window, operand 1']
    #allocation5 [shape = 's32[2]{0}', space=sflag, size = 0x8, scoped, tag = 'scoped memory for tpu_custom_call.1']
    #allocation6 [shape = 's32[2]{0}', space=sflag, size = 0x8, scoped, tag = 'scoped memory for tpu_custom_call.1']
    #allocation7 [shape = 'u8[196608]{0}', space=vmem, size = 0x30000, scoped, tag = 'input window, operand 2, single buffered']
    #allocation8 [shape = 's32[1]{0}', space=sflag, size = 0x4, scoped, tag = 'scoped memory for tpu_custom_call.1']
    #allocation9 [shape = 'u8[196608]{0}', space=vmem, size = 0x30000, scoped, tag = 'input window, operand 4, single buffered']
    #allocation10 [shape = 'u8[32768]{0}', space=vmem, size = 0x8000, scoped, tag = 'output window, operand 0']
    #allocation11 [shape = 'u8[4096]{0}', space=vmem, size = 0x1000, scoped, tag = 'output window, operand 1, single buffered']
    #allocation12 [shape = 's32[1]{0}', space=sflag, size = 0x4, scoped, tag = 'scoped memory for tpu_custom_call.1']
    %13 = vsyncpa [#allocation5], 0
    %s14 = scalar_lea.sflag [#allocation5], 1
    %15 = vsyncpa %s14, 0
    %16 = vsyncpa [#allocation8], 0
    %17 = vsyncpa [#allocation6], 0
    %s18 = scalar_lea.sflag [#allocation6], 1
    %19 = vsyncpa %s18, 0
    %20 = vsyncpa [#allocation12], 0
    loop: start=0, step=1, limit=4
    $region2: #{tpu_custom_call.1} parent=1 // loop_pre_header
      _
    $region3: #{tpu_custom_call.1} parent=1 // loop_header
      %s22 = sphi 0, %s26
      %p23 = scmp.ge.s32.totalorder %s22, 4
      %s30 = sphi 0, %s30
      %s32 = sphi 0, %s30
      %s33 = sphi 0, %s32
      %s47 = sphi 0, %s33
      %s53 = sphi 0, %s55
      %s56 = sphi 0, %s53
      %s57 = sphi 0, %s56
      %s73 = sphi 0, %s57
      %s77 = sphi 0, %s77
      %s79 = sphi 0, %s77
      %s80 = sphi 0, %s79
      %s94 = sphi 0, %s80
      %s98 = sphi 0, %s98
      %s100 = sphi 0, %s98
      %s101 = sphi 0, %s100
      %s115 = sphi 0, %s101
      %s119 = sphi 0, %s119
      %s121 = sphi 0, %s119
      %s122 = sphi 0, %s121
      %s136 = sphi 0, %s122
      %s140 = sphi 0, %s140
      %s142 = sphi 0, %s140
      %s143 = sphi 0, %s142
      %s157 = sphi 0, %s143
      %s163 = sphi 0, %s165
      %s166 = sphi 0, %s163
      %s167 = sphi 0, %s166
      %s183 = sphi 0, %s167
      %s187 = sphi 0, %s187
      %s189 = sphi 0, %s187
      %s190 = sphi 0, %s189
      %s204 = sphi 0, %s190
    $region4: #{tpu_custom_call.1} parent=1 // loop_header_branch
      %25 = sbr.rel (%p23) target = $region8
    $region5: #{tpu_custom_call.1} parent=1 // loop_body
      %s27 = ssub.s32 %s22, 1
      %s28 = ssub.s32 %s22, 2
      %s29 = sadd.s32 %s22, 1
      %s31 = sadd.s32 %s30, 1
      %p34 = scmp.eq.s32.totalorder %s22, 1
      %p35 = scmp.ne.s32.totalorder %s30, %s32
      %p36 = scmp.eq.s32.totalorder %s22, 0
      %p37 = por %p35, %p36
      %p38 = scmp.ne.s32.totalorder %s30, %s32
      %p39 = scmp.eq.s32.totalorder %s27, 1
      %p40 = por %p38, %p39
      %p41 = scmp.ne.s32.totalorder %s32, %s33
      %p42 = scmp.eq.s32.totalorder %s27, 0
      %p43 = por %p41, %p42
      %p44 = scmp.ne.s32.totalorder %s32, %s33
      %p45 = scmp.eq.s32.totalorder %s28, 1
      %p46 = por %p44, %p45
      %p48 = scmp.ne.s32.totalorder %s33, %s47
      %p49 = scmp.eq.s32.totalorder %s28, 0
      %p50 = por %p48, %p49
      %s51 = ssub.s32 %s22, %s29
      %p52 = scmp.eq.s32.totalorder %s51, 0
      %s54 = sadd.s32 %s53, 1
      %s55 = scalar_select %p52, %s53, %s54
      %p58 = pneg %p52
      %p59 = scmp.eq.s32.totalorder %s22, 1
      %p60 = por %p58, %p59
      %p61 = scmp.ne.s32.totalorder %s53, %s56
      %p62 = scmp.eq.s32.totalorder %s22, 0
      %p63 = por %p61, %p62
      %p64 = scmp.ne.s32.totalorder %s53, %s56
      %p65 = scmp.eq.s32.totalorder %s27, 1
      %p66 = por %p64, %p65
      %p67 = scmp.ne.s32.totalorder %s56, %s57
      %p68 = scmp.eq.s32.totalorder %s27, 0
      %p69 = por %p67, %p68
      %p70 = scmp.ne.s32.totalorder %s56, %s57
      %p71 = scmp.eq.s32.totalorder %s28, 1
      %p72 = por %p70, %p71
      %p74 = scmp.ne.s32.totalorder %s57, %s73
      %p75 = scmp.eq.s32.totalorder %s28, 0
      %p76 = por %p74, %p75
      %s78 = sadd.s32 %s77, 1
      %p81 = scmp.eq.s32.totalorder %s22, 1
      %p82 = scmp.ne.s32.totalorder %s77, %s79
      %p83 = scmp.eq.s32.totalorder %s22, 0
      %p84 = por %p82, %p83
      %p85 = scmp.ne.s32.totalorder %s77, %s79
      %p86 = scmp.eq.s32.totalorder %s27, 1
      %p87 = por %p85, %p86
      %p88 = scmp.ne.s32.totalorder %s79, %s80
      %p89 = scmp.eq.s32.totalorder %s27, 0
      %p90 = por %p88, %p89
      %p91 = scmp.ne.s32.totalorder %s79, %s80
      %p92 = scmp.eq.s32.totalorder %s28, 1
      %p93 = por %p91, %p92
      %p95 = scmp.ne.s32.totalorder %s80, %s94
      %p96 = scmp.eq.s32.totalorder %s28, 0
      %p97 = por %p95, %p96
      %s99 = sadd.s32 %s98, 1
      %p102 = scmp.eq.s32.totalorder %s22, 1
      %p103 = scmp.ne.s32.totalorder %s98, %s100
      %p104 = scmp.eq.s32.totalorder %s22, 0
      %p105 = por %p103, %p104
      %p106 = scmp.ne.s32.totalorder %s98, %s100
      %p107 = scmp.eq.s32.totalorder %s27, 1
      %p108 = por %p106, %p107
      %p109 = scmp.ne.s32.totalorder %s100, %s101
      %p110 = scmp.eq.s32.totalorder %s27, 0
      %p111 = por %p109, %p110
      %p112 = scmp.ne.s32.totalorder %s100, %s101
      %p113 = scmp.eq.s32.totalorder %s28, 1
      %p114 = por %p112, %p113
      %p116 = scmp.ne.s32.totalorder %s101, %s115
      %p117 = scmp.eq.s32.totalorder %s28, 0
      %p118 = por %p116, %p117
      %s120 = sadd.s32 %s119, 1
      %p123 = scmp.eq.s32.totalorder %s22, 1
      %p124 = scmp.ne.s32.totalorder %s119, %s121
      %p125 = scmp.eq.s32.totalorder %s22, 0
      %p126 = por %p124, %p125
      %p127 = scmp.ne.s32.totalorder %s119, %s121
      %p128 = scmp.eq.s32.totalorder %s27, 1
      %p129 = por %p127, %p128
      %p130 = scmp.ne.s32.totalorder %s121, %s122
      %p131 = scmp.eq.s32.totalorder %s27, 0
      %p132 = por %p130, %p131
      %p133 = scmp.ne.s32.totalorder %s121, %s122
      %p134 = scmp.eq.s32.totalorder %s28, 1
      %p135 = por %p133, %p134
      %p137 = scmp.ne.s32.totalorder %s122, %s136
      %p138 = scmp.eq.s32.totalorder %s28, 0
      %p139 = por %p137, %p138
      %s141 = sadd.s32 %s140, 1
      %p144 = scmp.eq.s32.totalorder %s22, 1
      %p145 = scmp.ne.s32.totalorder %s140, %s142
      %p146 = scmp.eq.s32.totalorder %s22, 0
      %p147 = por %p145, %p146
      %p148 = scmp.ne.s32.totalorder %s140, %s142
      %p149 = scmp.eq.s32.totalorder %s27, 1
      %p150 = por %p148, %p149
      %p151 = scmp.ne.s32.totalorder %s142, %s143
      %p152 = scmp.eq.s32.totalorder %s27, 0
      %p153 = por %p151, %p152
      %p154 = scmp.ne.s32.totalorder %s142, %s143
      %p155 = scmp.eq.s32.totalorder %s28, 1
      %p156 = por %p154, %p155
      %p158 = scmp.ne.s32.totalorder %s143, %s157
      %p159 = scmp.eq.s32.totalorder %s28, 0
      %p160 = por %p158, %p159
      %s161 = ssub.s32 %s22, %s29
      %p162 = scmp.eq.s32.totalorder %s161, 0
      %s164 = sadd.s32 %s163, 1
      %s165 = scalar_select %p162, %s163, %s164
      %p168 = pneg %p162
      %p169 = scmp.eq.s32.totalorder %s22, 1
      %p170 = por %p168, %p169
      %p171 = scmp.ne.s32.totalorder %s163, %s166
      %p172 = scmp.eq.s32.totalorder %s22, 0
      %p173 = por %p171, %p172
      %p174 = scmp.ne.s32.totalorder %s163, %s166
      %p175 = scmp.eq.s32.totalorder %s27, 1
      %p176 = por %p174, %p175
      %p177 = scmp.ne.s32.totalorder %s166, %s167
      %p178 = scmp.eq.s32.totalorder %s27, 0
      %p179 = por %p177, %p178
      %p180 = scmp.ne.s32.totalorder %s166, %s167
      %p181 = scmp.eq.s32.totalorder %s28, 1
      %p182 = por %p180, %p181
      %p184 = scmp.ne.s32.totalorder %s167, %s183
      %p185 = scmp.eq.s32.totalorder %s28, 0
      %p186 = por %p184, %p185
      %s188 = sadd.s32 %s187, 1
      %p191 = scmp.eq.s32.totalorder %s22, 1
      %p192 = scmp.ne.s32.totalorder %s187, %s189
      %p193 = scmp.eq.s32.totalorder %s22, 0
      %p194 = por %p192, %p193
      %p195 = scmp.ne.s32.totalorder %s187, %s189
      %p196 = scmp.eq.s32.totalorder %s27, 1
      %p197 = por %p195, %p196
      %p198 = scmp.ne.s32.totalorder %s189, %s190
      %p199 = scmp.eq.s32.totalorder %s27, 0
      %p200 = por %p198, %p199
      %p201 = scmp.ne.s32.totalorder %s189, %s190
      %p202 = scmp.eq.s32.totalorder %s28, 1
      %p203 = por %p201, %p202
      %p205 = scmp.ne.s32.totalorder %s190, %s204
      %p206 = scmp.eq.s32.totalorder %s28, 0
      %p207 = por %p205, %p206
      %p208 = scmp.le.s32.totalorder 1, %s22
      %p209 = scmp.lt.s32.totalorder %s22, 3
      %p210 = pnand %p208, %p209
      %p211 = pneg %p210
      // Predicated region
      $region9: #{tpu_custom_call.1} parent=5 // pred_check
        _
      $region10: #{tpu_custom_call.1} parent=5 // pred_check_branch
        %213 = sbr.rel (%p210) target = $region12
      $region11: #{tpu_custom_call.1} parent=5 // pred_region
        %s214 = ssub.s32 %s22, 1
        // Predicated region
        $region13: #{tpu_custom_call.1} parent=11 // pred_check
          %p215 = pneg %p43
        $region14: #{tpu_custom_call.1} parent=11 // pred_check_branch
          %217 = sbr.rel (%p215) target = $region16
        $region15: #{tpu_custom_call.1} parent=11 // pred_region
          _
        $region16: #{tpu_custom_call.1} parent=11 // pred_fallthru
          _
        // Predicated region
        $region17: #{tpu_custom_call.1} parent=11 // pred_check
          %p218 = pneg %p90
        $region18: #{tpu_custom_call.1} parent=11 // pred_check_branch
          %220 = sbr.rel (%p218) target = $region20
        $region19: #{tpu_custom_call.1} parent=11 // pred_region
          %222 = vsyncadd [#allocation8], 0
          %s223 = sshll.u32 %s2, 4
          %s224 = int_to_ptr.hbm [resolvable:$true] %s223
          %s225 = sshll.u32 [#allocation7], 4
          %s226 = int_to_ptr.vmem [resolvable:$true] %s225
          %231 = dma.hbm_to_vmem [thread:$0]  %s224, 6144, %s226, [#allocation8], 384, 384, 24
        $region20: #{tpu_custom_call.1} parent=11 // pred_fallthru
          _
        // Predicated region
        $region21: #{tpu_custom_call.1} parent=11 // pred_check
          %p232 = pneg %p111
        $region22: #{tpu_custom_call.1} parent=11 // pred_check_branch
          %234 = sbr.rel (%p232) target = $region24
        $region23: #{tpu_custom_call.1} parent=11 // pred_region
          _
        $region24: #{tpu_custom_call.1} parent=11 // pred_fallthru
          _
        // Predicated region
        $region25: #{tpu_custom_call.1} parent=11 // pred_check
          %p235 = pneg %p132
        $region26: #{tpu_custom_call.1} parent=11 // pred_check_branch
          %237 = sbr.rel (%p235) target = $region28
        $region27: #{tpu_custom_call.1} parent=11 // pred_region
          %239 = vsyncadd [#allocation8], 0
          %s240 = sshll.u32 %s4, 4
          %s241 = int_to_ptr.hbm [resolvable:$true] %s240
          %s242 = sshll.u32 [#allocation9], 4
          %s243 = int_to_ptr.vmem [resolvable:$true] %s242
          %248 = dma.hbm_to_vmem [thread:$0]  %s241, 6144, %s243, [#allocation8], 384, 384, 24
        $region28: #{tpu_custom_call.1} parent=11 // pred_fallthru
          _
        // Predicated region
        $region29: #{tpu_custom_call.1} parent=11 // pred_check
          %p249 = pneg %p153
        $region30: #{tpu_custom_call.1} parent=11 // pred_check_branch
          %251 = sbr.rel (%p249) target = $region32
        $region31: #{tpu_custom_call.1} parent=11 // pred_region
          _
        $region32: #{tpu_custom_call.1} parent=11 // pred_fallthru
          _
      $region12: #{tpu_custom_call.1} parent=5 // pred_fallthru
        _
      %p252 = scmp.lt.s32.totalorder %s22, 2
      // Predicated region
      $region33: #{tpu_custom_call.1} parent=5 // pred_check
        %p253 = pneg %p252
      $region34: #{tpu_custom_call.1} parent=5 // pred_check_branch
        %255 = sbr.rel (%p253) target = $region36
      $region35: #{tpu_custom_call.1} parent=5 // pred_region
        // Predicated region
        $region37: #{tpu_custom_call.1} parent=35 // pred_check
          %p256 = pneg %p63
        $region38: #{tpu_custom_call.1} parent=35 // pred_check_branch
          %258 = sbr.rel (%p256) target = $region40
        $region39: #{tpu_custom_call.1} parent=35 // pred_region
          %s259 = sand.u32 %s53, 1
          %s260 = scalar_lea.sflag [#allocation5], %s259
          %s261 = sand.u32 %s53, 1
          %s262 = smul.addr %s261, 32
          %s263 = scalar_lea.vmem [#allocation4], %s262
          %s264 = smul.u32 4, %s22
          %266 = vsyncadd %s260, 0
          %s267 = smul.addr %s264, 8
          %s268 = scalar_lea.hbm %s1, %s267
          %s269 = sshll.u32 %s268, 4
          %s270 = int_to_ptr.hbm [resolvable:$true] %s269
          %s271 = sshll.u32 %s263, 4
          %s272 = int_to_ptr.vmem [resolvable:$true] %s271
          %277 = dma.hbm_to_vmem [thread:$0]  %s270, 512, %s272, %s260, 128, 128, 8
        $region40: #{tpu_custom_call.1} parent=35 // pred_fallthru
          _
      $region36: #{tpu_custom_call.1} parent=5 // pred_fallthru
        _
      %p278 = scmp.le.s32.totalorder 1, %s22
      %p279 = scmp.lt.s32.totalorder %s22, 3
      %p280 = pnand %p278, %p279
      %p281 = pneg %p280
      // Predicated region
      $region41: #{tpu_custom_call.1} parent=5 // pred_check
        _
      $region42: #{tpu_custom_call.1} parent=5 // pred_check_branch
        %283 = sbr.rel (%p280) target = $region44
      $region43: #{tpu_custom_call.1} parent=5 // pred_region
        %s284 = ssub.s32 %s22, 1
        %s285 = sand.u32 %s56, 1
        %s286 = scalar_lea.sflag [#allocation5], %s285
        %s287 = sand.u32 %s56, 1
        %s288 = smul.addr %s287, 32
        %s289 = scalar_lea.vmem [#allocation4], %s288
        // Predicated region
        $region45: #{tpu_custom_call.1} parent=43 // pred_check
          %p290 = pneg %p69
        $region46: #{tpu_custom_call.1} parent=43 // pred_check_branch
          %292 = sbr.rel (%p290) target = $region48
        $region47: #{tpu_custom_call.1} parent=43 // pred_region
          %294 = dma.done %s286, 512
        $region48: #{tpu_custom_call.1} parent=43 // pred_fallthru
          _
        // Predicated region
        $region49: #{tpu_custom_call.1} parent=43 // pred_check
          %p295 = pneg %p90
        $region50: #{tpu_custom_call.1} parent=43 // pred_check_branch
          %297 = sbr.rel (%p295) target = $region52
        $region51: #{tpu_custom_call.1} parent=43 // pred_region
          %299 = dma.done [#allocation8], 6144
        $region52: #{tpu_custom_call.1} parent=43 // pred_fallthru
          _
        // Predicated region
        $region53: #{tpu_custom_call.1} parent=43 // pred_check
          %p300 = pneg %p132
        $region54: #{tpu_custom_call.1} parent=43 // pred_check_branch
          %302 = sbr.rel (%p300) target = $region56
        $region55: #{tpu_custom_call.1} parent=43 // pred_region
          %304 = dma.done [#allocation8], 6144
        $region56: #{tpu_custom_call.1} parent=43 // pred_fallthru
          _
        %p305 = pneg %p43
        %p306 = pneg %p40
        %s307 = sand.u32 %s56, 1
        %s308 = scalar_lea.sflag [#allocation5], %s307
        %s309 = sand.u32 %s56, 1
        %s310 = smul.addr %s309, 32
        %s311 = scalar_lea.vmem [#allocation4], %s310
        %p312 = pneg %p69
        %p313 = pneg %p66
        %p314 = pneg %p90
        %p315 = pneg %p87
        %p316 = pneg %p111
        %p317 = pneg %p108
        %p318 = pneg %p132
        %p319 = pneg %p129
        %p320 = pneg %p153
        %p321 = pneg %p150
        %p322 = pneg %p179
        %p323 = pneg %p176
        %s324 = sand.u32 %s166, 1
        %s325 = scalar_lea.sflag [#allocation6], %s324
        %s326 = sand.u32 %s166, 1
        %s327 = smul.addr %s326, 32
        %s328 = scalar_lea.vmem [#allocation10], %s327
        %p329 = pneg %p200
        %p330 = pneg %p197
        %s331 = smul.u32 4, %s27
        %s332 = smul.u32 4, %s27
        %v333 = vld [vmem:[%s289] sm:$0xff]
        %v334 = vld [vmem:[%s289 + $0x8] sm:$0xff]
        %v335 = vld [vmem:[%s289 + $0x10] sm:$0xff]
        %v336 = vld [vmem:[%s289 + $0x18] sm:$0xff]
        %v337 = vld [vmem:[#allocation7] sm:$0xff]
        %v338 = vld [vmem:[#allocation7 + $0x8] sm:$0xff]
        %v339 = vld [vmem:[#allocation7 + $0x10] sm:$0xff]
        %v340 = vld [vmem:[#allocation7 + $0x18] sm:$0xff]
        %v341 = vld [vmem:[#allocation7 + $0x20] sm:$0xff]
        %v342 = vld [vmem:[#allocation7 + $0x28] sm:$0xff]
        %v343 = vld [vmem:[#allocation7 + $0x30] sm:$0xff]
        %v344 = vld [vmem:[#allocation7 + $0x38] sm:$0xff]
        %v345 = vld [vmem:[#allocation7 + $0x40] sm:$0xff]
        %v346 = vld [vmem:[#allocation7 + $0x48] sm:$0xff]
        %v347 = vld [vmem:[#allocation7 + $0x50] sm:$0xff]
        %v348 = vld [vmem:[#allocation7 + $0x58] sm:$0xff]
        %v349 = vld [vmem:[#allocation7 + $0x60] sm:$0xff]
        %v350 = vld [vmem:[#allocation7 + $0x68] sm:$0xff]
        %v351 = vld [vmem:[#allocation7 + $0x70] sm:$0xff]
        %v352 = vld [vmem:[#allocation7 + $0x78] sm:$0xff]
        %v353 = vld [vmem:[#allocation7 + $0x80] sm:$0xff]
        %v354 = vld [vmem:[#allocation7 + $0x88] sm:$0xff]
        %v355 = vld [vmem:[#allocation7 + $0x90] sm:$0xff]
        %v356 = vld [vmem:[#allocation7 + $0x98] sm:$0xff]
        %v357 = vld [vmem:[#allocation7 + $0xa0] sm:$0xff]
        %v358 = vld [vmem:[#allocation7 + $0xa8] sm:$0xff]
        %v359 = vld [vmem:[#allocation7 + $0xb0] sm:$0xff]
        %v360 = vld [vmem:[#allocation7 + $0xb8] sm:$0xff]
        %v361 = vld [vmem:[#allocation7 + $0xc0] sm:$0xff]
        %v362 = vld [vmem:[#allocation7 + $0xc8] sm:$0xff]
        %v363 = vld [vmem:[#allocation7 + $0xd0] sm:$0xff]
        %v364 = vld [vmem:[#allocation7 + $0xd8] sm:$0xff]
        %v365 = vld [vmem:[#allocation7 + $0xe0] sm:$0xff]
        %v366 = vld [vmem:[#allocation7 + $0xe8] sm:$0xff]
        %v367 = vld [vmem:[#allocation7 + $0xf0] sm:$0xff]
        %v368 = vld [vmem:[#allocation7 + $0xf8] sm:$0xff]
        %v369 = vld [vmem:[#allocation7 + $0x100] sm:$0xff]
        %v370 = vld [vmem:[#allocation7 + $0x108] sm:$0xff]
        %v371 = vld [vmem:[#allocation7 + $0x110] sm:$0xff]
        %v372 = vld [vmem:[#allocation7 + $0x118] sm:$0xff]
        %v373 = vld [vmem:[#allocation7 + $0x120] sm:$0xff]
        %v374 = vld [vmem:[#allocation7 + $0x128] sm:$0xff]
        %v375 = vld [vmem:[#allocation7 + $0x130] sm:$0xff]
        %v376 = vld [vmem:[#allocation7 + $0x138] sm:$0xff]
        %v377 = vld [vmem:[#allocation7 + $0x140] sm:$0xff]
        %v378 = vld [vmem:[#allocation7 + $0x148] sm:$0xff]
        %v379 = vld [vmem:[#allocation7 + $0x150] sm:$0xff]
        %v380 = vld [vmem:[#allocation7 + $0x158] sm:$0xff]
        %v381 = vld [vmem:[#allocation7 + $0x160] sm:$0xff]
        %v382 = vld [vmem:[#allocation7 + $0x168] sm:$0xff]
        %v383 = vld [vmem:[#allocation7 + $0x170] sm:$0xff]
        %v384 = vld [vmem:[#allocation7 + $0x178] sm:$0xff]
        %v385 = vld [vmem:[%s3] sm:$0x7]
        %v387 = vperm.slane %v385, 0
        %v388 = vperm.slane %v385, 1
        %v389 = vperm.slane %v385, 2
        %393 = vmatpush.msra.mxu0 %v382
        %394 = vmatpush.msra.mxu0 %v379
        %395 = vmatpush.msra.mxu0 %v376
        %396 = vmatpush.msra.mxu0 %v373
        %397 = vmatpush.msra.mxu0 %v370
        %398 = vmatpush.msra.mxu0 %v367
        %399 = vmatpush.msra.mxu0 %v364
        %400 = vmatpush.msra.mxu0 %v361
        %401 = vmatpush.msra.mxu0 %v358
        %402 = vmatpush.msra.mxu0 %v355
        %403 = vmatpush.msra.mxu0 %v352
        %404 = vmatpush.msra.mxu0 %v349
        %405 = vmatpush.msra.mxu0 %v346
        %406 = vmatpush.msra.mxu0 %v343
        %407 = vmatpush.msra.mxu0 %v340
        %408 = vmatpush.msra.mxu0 %v337
        %409 = vmatmul.f32.gmra.mxu0 %v333
        %v410 = vpop.f32.mrf.mxu0
        %v411 = vadd.f32 %v387, %v410
        %412 = vmatmul.f32.gmra.mxu0 %v334
        %v413 = vpop.f32.mrf.mxu0
        %v414 = vadd.f32 %v387, %v413
        %415 = vmatmul.f32.gmra.mxu0 %v335
        %v416 = vpop.f32.mrf.mxu0
        %v417 = vadd.f32 %v387, %v416
        %418 = vmatmul.f32.gmra.mxu0 %v336
        %v419 = vpop.f32.mrf.mxu0
        %v420 = vadd.f32 %v387, %v419
        %421 = vdwg.mxu0
        %422 = vmatpush.msra.mxu0 %v383
        %423 = vmatpush.msra.mxu0 %v380
        %424 = vmatpush.msra.mxu0 %v377
        %425 = vmatpush.msra.mxu0 %v374
        %426 = vmatpush.msra.mxu0 %v371
        %427 = vmatpush.msra.mxu0 %v368
        %428 = vmatpush.msra.mxu0 %v365
        %429 = vmatpush.msra.mxu0 %v362
        %430 = vmatpush.msra.mxu0 %v359
        %431 = vmatpush.msra.mxu0 %v356
        %432 = vmatpush.msra.mxu0 %v353
        %433 = vmatpush.msra.mxu0 %v350
        %434 = vmatpush.msra.mxu0 %v347
        %435 = vmatpush.msra.mxu0 %v344
        %436 = vmatpush.msra.mxu0 %v341
        %437 = vmatpush.msra.mxu0 %v338
        %438 = vmatmul.f32.gmra.mxu0 %v333
        %v439 = vpop.f32.mrf.mxu0
        %v440 = vadd.f32 %v388, %v439
        %441 = vmatmul.f32.gmra.mxu0 %v334
        %v442 = vpop.f32.mrf.mxu0
        %v443 = vadd.f32 %v388, %v442
        %444 = vmatmul.f32.gmra.mxu0 %v335
        %v445 = vpop.f32.mrf.mxu0
        %v446 = vadd.f32 %v388, %v445
        %447 = vmatmul.f32.gmra.mxu0 %v336
        %v448 = vpop.f32.mrf.mxu0
        %v449 = vadd.f32 %v388, %v448
        %450 = vdwg.mxu0
        %451 = vmatpush.msra.mxu0 %v384
        %452 = vmatpush.msra.mxu0 %v381
        %453 = vmatpush.msra.mxu0 %v378
        %454 = vmatpush.msra.mxu0 %v375
        %455 = vmatpush.msra.mxu0 %v372
        %456 = vmatpush.msra.mxu0 %v369
        %457 = vmatpush.msra.mxu0 %v366
        %458 = vmatpush.msra.mxu0 %v363
        %459 = vmatpush.msra.mxu0 %v360
        %460 = vmatpush.msra.mxu0 %v357
        %461 = vmatpush.msra.mxu0 %v354
        %462 = vmatpush.msra.mxu0 %v351
        %463 = vmatpush.msra.mxu0 %v348
        %464 = vmatpush.msra.mxu0 %v345
        %465 = vmatpush.msra.mxu0 %v342
        %466 = vmatpush.msra.mxu0 %v339
        %467 = vmatmul.f32.gmra.mxu0 %v333
        %v468 = vpop.f32.mrf.mxu0
        %v469 = vadd.f32 %v389, %v468
        %470 = vmatmul.f32.gmra.mxu0 %v334
        %v471 = vpop.f32.mrf.mxu0
        %v472 = vadd.f32 %v389, %v471
        %473 = vmatmul.f32.gmra.mxu0 %v335
        %v474 = vpop.f32.mrf.mxu0
        %v475 = vadd.f32 %v389, %v474
        %476 = vmatmul.f32.gmra.mxu0 %v336
        %v477 = vpop.f32.mrf.mxu0
        %v478 = vadd.f32 %v389, %v477
        %479 = vdwg.mxu0
        %480 = vst [vmem:[#allocation3] sm:$0xff] %v411
        %481 = vst [vmem:[#allocation3 + $0x8] sm:$0xff] %v440
        %482 = vst [vmem:[#allocation3 + $0x10] sm:$0xff] %v469
        %483 = vst [vmem:[#allocation3 + $0x18] sm:$0xff] %v414
        %484 = vst [vmem:[#allocation3 + $0x20] sm:$0xff] %v443
        %485 = vst [vmem:[#allocation3 + $0x28] sm:$0xff] %v472
        %486 = vst [vmem:[#allocation3 + $0x30] sm:$0xff] %v417
        %487 = vst [vmem:[#allocation3 + $0x38] sm:$0xff] %v446
        %488 = vst [vmem:[#allocation3 + $0x40] sm:$0xff] %v475
        %489 = vst [vmem:[#allocation3 + $0x48] sm:$0xff] %v420
        %490 = vst [vmem:[#allocation3 + $0x50] sm:$0xff] %v449
        %491 = vst [vmem:[#allocation3 + $0x58] sm:$0xff] %v478
        %p492 = scmp.eq.s32.totalorder %s27, 0
        // Predicated region
        $region57: #{tpu_custom_call.1} parent=43 // pred_check
          %p493 = pneg %p492
        $region58: #{tpu_custom_call.1} parent=43 // pred_check_branch
          %495 = sbr.rel (%p493) target = $region60
        $region59: #{tpu_custom_call.1} parent=43 // pred_region
          %496 = vst [vmem:[#allocation2] sm:$0xff] 0.0
        $region60: #{tpu_custom_call.1} parent=43 // pred_fallthru
          _
        %v497 = vld [vmem:[%s5] sm:$0x1]
        %v498 = vld [vmem:[%s0] sm:$0xff]
        %499 = vset.pattern.permute.xlu0 0
        %500 = vperm.xlu0 %499, %v498
        %v501 = vpop.permute.xlu0 %500
        %s502 = smul.u32 %s27, 4
        %v503 = vld [vmem:[#allocation2] sm:$0xff]
        %v504 = vld [vmem:[#allocation3] sm:$0xff]
        %v505 = vld [vmem:[#allocation3 + $0x8] sm:$0xff]
        %v506 = vld [vmem:[#allocation3 + $0x10] sm:$0xff]
        %v507 = vld [vmem:[#allocation9] sm:$0xff]
        %v508 = vld [vmem:[#allocation9 + $0x8] sm:$0xff]
        %v509 = vld [vmem:[#allocation9 + $0x10] sm:$0xff]
        %v510 = vld [vmem:[#allocation9 + $0x18] sm:$0xff]
        %v511 = vld [vmem:[#allocation9 + $0x20] sm:$0xff]
        %v512 = vld [vmem:[#allocation9 + $0x28] sm:$0xff]
        %v513 = vld [vmem:[#allocation9 + $0x30] sm:$0xff]
        %v514 = vld [vmem:[#allocation9 + $0x38] sm:$0xff]
        %v515 = vld [vmem:[#allocation9 + $0x40] sm:$0xff]
        %v516 = vld [vmem:[#allocation9 + $0x48] sm:$0xff]
        %v517 = vld [vmem:[#allocation9 + $0x50] sm:$0xff]
        %v518 = vld [vmem:[#allocation9 + $0x58] sm:$0xff]
        %v519 = vld [vmem:[#allocation9 + $0x60] sm:$0xff]
        %v520 = vld [vmem:[#allocation9 + $0x68] sm:$0xff]
        %v521 = vld [vmem:[#allocation9 + $0x70] sm:$0xff]
        %v522 = vld [vmem:[#allocation9 + $0x78] sm:$0xff]
        %v523 = vld [vmem:[#allocation9 + $0x80] sm:$0xff]
        %v524 = vld [vmem:[#allocation9 + $0x88] sm:$0xff]
        %v525 = vld [vmem:[#allocation9 + $0x90] sm:$0xff]
        %v526 = vld [vmem:[#allocation9 + $0x98] sm:$0xff]
        %v527 = vld [vmem:[#allocation9 + $0xa0] sm:$0xff]
        %v528 = vld [vmem:[#allocation9 + $0xa8] sm:$0xff]
        %v529 = vld [vmem:[#allocation9 + $0xb0] sm:$0xff]
        %v530 = vld [vmem:[#allocation9 + $0xb8] sm:$0xff]
        %v531 = vld [vmem:[#allocation9 + $0xc0] sm:$0xff]
        %v532 = vld [vmem:[#allocation9 + $0xc8] sm:$0xff]
        %v533 = vld [vmem:[#allocation9 + $0xd0] sm:$0xff]
        %v534 = vld [vmem:[#allocation9 + $0xd8] sm:$0xff]
        %v535 = vld [vmem:[#allocation9 + $0xe0] sm:$0xff]
        %v536 = vld [vmem:[#allocation9 + $0xe8] sm:$0xff]
        %v537 = vld [vmem:[#allocation9 + $0xf0] sm:$0xff]
        %v538 = vld [vmem:[#allocation9 + $0xf8] sm:$0xff]
        %v539 = vld [vmem:[#allocation9 + $0x100] sm:$0xff]
        %v540 = vld [vmem:[#allocation9 + $0x108] sm:$0xff]
        %v541 = vld [vmem:[#allocation9 + $0x110] sm:$0xff]
        %v542 = vld [vmem:[#allocation9 + $0x118] sm:$0xff]
        %v543 = vld [vmem:[#allocation9 + $0x120] sm:$0xff]
        %v544 = vld [vmem:[#allocation9 + $0x128] sm:$0xff]
        %v545 = vld [vmem:[#allocation9 + $0x130] sm:$0xff]
        %v546 = vld [vmem:[#allocation9 + $0x138] sm:$0xff]
        %v547 = vld [vmem:[#allocation9 + $0x140] sm:$0xff]
        %v548 = vld [vmem:[#allocation9 + $0x148] sm:$0xff]
        %v549 = vld [vmem:[#allocation9 + $0x150] sm:$0xff]
        %v550 = vld [vmem:[#allocation9 + $0x158] sm:$0xff]
        %v551 = vld [vmem:[#allocation9 + $0x160] sm:$0xff]
        %v552 = vld [vmem:[#allocation9 + $0x168] sm:$0xff]
        %v553 = vld [vmem:[#allocation9 + $0x170] sm:$0xff]
        %v554 = vld [vmem:[#allocation9 + $0x178] sm:$0xff]
        %555 = vmatpush.msra.mxu0 %v552
        %556 = vmatpush.msra.mxu0 %v549
        %557 = vmatpush.msra.mxu0 %v546
        %558 = vmatpush.msra.mxu0 %v543
        %559 = vmatpush.msra.mxu0 %v540
        %560 = vmatpush.msra.mxu0 %v537
        %561 = vmatpush.msra.mxu0 %v534
        %562 = vmatpush.msra.mxu0 %v531
        %563 = vmatpush.msra.mxu0 %v528
        %564 = vmatpush.msra.mxu0 %v525
        %565 = vmatpush.msra.mxu0 %v522
        %566 = vmatpush.msra.mxu0 %v519
        %567 = vmatpush.msra.mxu0 %v516
        %568 = vmatpush.msra.mxu0 %v513
        %569 = vmatpush.msra.mxu0 %v510
        %570 = vmatpush.msra.mxu0 %v507
        %571 = vmatmul.f32.gmra.mxu0 %v503
        %v572 = vpop.f32.mrf.mxu0
        %v573 = vadd.f32 0.0, %v572
        %574 = vdwg.mxu0
        %575 = vmatpush.msra.mxu0 %v553
        %576 = vmatpush.msra.mxu0 %v550
        %577 = vmatpush.msra.mxu0 %v547
        %578 = vmatpush.msra.mxu0 %v544
        %579 = vmatpush.msra.mxu0 %v541
        %580 = vmatpush.msra.mxu0 %v538
        %581 = vmatpush.msra.mxu0 %v535
        %582 = vmatpush.msra.mxu0 %v532
        %583 = vmatpush.msra.mxu0 %v529
        %584 = vmatpush.msra.mxu0 %v526
        %585 = vmatpush.msra.mxu0 %v523
        %586 = vmatpush.msra.mxu0 %v520
        %587 = vmatpush.msra.mxu0 %v517
        %588 = vmatpush.msra.mxu0 %v514
        %589 = vmatpush.msra.mxu0 %v511
        %590 = vmatpush.msra.mxu0 %v508
        %591 = vmatmul.f32.gmra.mxu0 %v503
        %v592 = vpop.f32.mrf.mxu0
        %v593 = vadd.f32 0.0, %v592
        %594 = vdwg.mxu0
        %595 = vmatpush.msra.mxu0 %v554
        %596 = vmatpush.msra.mxu0 %v551
        %597 = vmatpush.msra.mxu0 %v548
        %598 = vmatpush.msra.mxu0 %v545
        %599 = vmatpush.msra.mxu0 %v542
        %600 = vmatpush.msra.mxu0 %v539
        %601 = vmatpush.msra.mxu0 %v536
        %602 = vmatpush.msra.mxu0 %v533
        %603 = vmatpush.msra.mxu0 %v530
        %604 = vmatpush.msra.mxu0 %v527
        %605 = vmatpush.msra.mxu0 %v524
        %606 = vmatpush.msra.mxu0 %v521
        %607 = vmatpush.msra.mxu0 %v518
        %608 = vmatpush.msra.mxu0 %v515
        %609 = vmatpush.msra.mxu0 %v512
        %610 = vmatpush.msra.mxu0 %v509
        %611 = vmatmul.f32.gmra.mxu0 %v503
        %v612 = vpop.f32.mrf.mxu0
        %v613 = vadd.f32 0.0, %v612
        %614 = vdwg.mxu0
        %v615 = vadd.f32 %v504, %v573
        %v616 = vxor.u32 %v615, 2147483648
        %v617 = vmul.f32 %v616, 1.442695
        %v618 = vpow.pop %v617
        %v619 = vadd.f32 %v618, 1.0
        %v620 = vrcp.pop %v619
        %v621 = vmul.f32 %v619, %v620
        %v622 = vsub.f32 1.0, %v621
        %v623 = vmul.f32 %v620, %v622
        %v624 = vadd.f32 %v620, %v623
        %vm625 = vweird.f32 %v619
        %vm626 = vweird.f32 %v620
        %vm627 = vmor %vm625, %vm626
        %v628 = vsel %vm627, %v620, %v624
        %v629 = vand.u32 2147483647, %v619
        %vm630 = vcmp.eq.f32.partialorder %v629, 8.507059e+37
        %v631 = vand.u32 %v619, 2147483648
        %v632 = vor.u32 1.1754944e-38, %v631
        %v633 = vsel %vm630, %v632, %v628
        %v634 = vmul.f32 1.0, %v633
        %v635 = vadd.f32 %v505, %v593
        %v636 = vxor.u32 %v635, 2147483648
        %v637 = vmul.f32 %v636, 1.442695
        %v638 = vpow.pop %v637
        %v639 = vadd.f32 %v638, 1.0
        %v640 = vrcp.pop %v639
        %v641 = vmul.f32 %v639, %v640
        %v642 = vsub.f32 1.0, %v641
        %v643 = vmul.f32 %v640, %v642
        %v644 = vadd.f32 %v640, %v643
        %vm645 = vweird.f32 %v639
        %vm646 = vweird.f32 %v640
        %vm647 = vmor %vm645, %vm646
        %v648 = vsel %vm647, %v640, %v644
        %v649 = vand.u32 2147483647, %v639
        %vm650 = vcmp.eq.f32.partialorder %v649, 8.507059e+37
        %v651 = vand.u32 %v639, 2147483648
        %v652 = vor.u32 1.1754944e-38, %v651
        %v653 = vsel %vm650, %v652, %v648
        %v654 = vmul.f32 1.0, %v653
        %v656 = vperm.slane %v497, 0
        %v658 = vadd.f32 %v613, %v656
        %v659 = vmul.f32 %v634, %v658
        %v660 = vadd.f32 %v506, %v659
        %v661 = vtanh.pop %v660
        %v662 = vsub.f32 1.0, %v654
        %v663 = vmul.f32 %v662, %v661
        %v664 = vmul.f32 %v654, %v503
        %v665 = vadd.f32 %v663, %v664
        %v666 = vstv %s502
        %vm667 = vcmp.lt.s32.totalorder %v666, %v501
        %v668 = vsel %vm667, %v665, %v503
        %v669 = vsel %vm667, %v665, 0.0
        %670 = vst [vmem:[%s328] sm:$0xff] %v669
        %s671 = scalar_lea.vmem [#allocation3], 24
        %v672 = vld [vmem:[%s671] sm:$0xff]
        %v673 = vld [vmem:[%s671 + $0x8] sm:$0xff]
        %v674 = vld [vmem:[%s671 + $0x10] sm:$0xff]
        %v675 = vld [vmem:[#allocation9] sm:$0xff]
        %v676 = vld [vmem:[#allocation9 + $0x8] sm:$0xff]
        %v677 = vld [vmem:[#allocation9 + $0x10] sm:$0xff]
        %v678 = vld [vmem:[#allocation9 + $0x18] sm:$0xff]
        %v679 = vld [vmem:[#allocation9 + $0x20] sm:$0xff]
        %v680 = vld [vmem:[#allocation9 + $0x28] sm:$0xff]
        %v681 = vld [vmem:[#allocation9 + $0x30] sm:$0xff]
        %v682 = vld [vmem:[#allocation9 + $0x38] sm:$0xff]
        %v683 = vld [vmem:[#allocation9 + $0x40] sm:$0xff]
        %v684 = vld [vmem:[#allocation9 + $0x48] sm:$0xff]
        %v685 = vld [vmem:[#allocation9 + $0x50] sm:$0xff]
        %v686 = vld [vmem:[#allocation9 + $0x58] sm:$0xff]
        %v687 = vld [vmem:[#allocation9 + $0x60] sm:$0xff]
        %v688 = vld [vmem:[#allocation9 + $0x68] sm:$0xff]
        %v689 = vld [vmem:[#allocation9 + $0x70] sm:$0xff]
        %v690 = vld [vmem:[#allocation9 + $0x78] sm:$0xff]
        %v691 = vld [vmem:[#allocation9 + $0x80] sm:$0xff]
        %v692 = vld [vmem:[#allocation9 + $0x88] sm:$0xff]
        %v693 = vld [vmem:[#allocation9 + $0x90] sm:$0xff]
        %v694 = vld [vmem:[#allocation9 + $0x98] sm:$0xff]
        %v695 = vld [vmem:[#allocation9 + $0xa0] sm:$0xff]
        %v696 = vld [vmem:[#allocation9 + $0xa8] sm:$0xff]
        %v697 = vld [vmem:[#allocation9 + $0xb0] sm:$0xff]
        %v698 = vld [vmem:[#allocation9 + $0xb8] sm:$0xff]
        %v699 = vld [vmem:[#allocation9 + $0xc0] sm:$0xff]
        %v700 = vld [vmem:[#allocation9 + $0xc8] sm:$0xff]
        %v701 = vld [vmem:[#allocation9 + $0xd0] sm:$0xff]
        %v702 = vld [vmem:[#allocation9 + $0xd8] sm:$0xff]
        %v703 = vld [vmem:[#allocation9 + $0xe0] sm:$0xff]
        %v704 = vld [vmem:[#allocation9 + $0xe8] sm:$0xff]
        %v705 = vld [vmem:[#allocation9 + $0xf0] sm:$0xff]
        %v706 = vld [vmem:[#allocation9 + $0xf8] sm:$0xff]
        %v707 = vld [vmem:[#allocation9 + $0x100] sm:$0xff]
        %v708 = vld [vmem:[#allocation9 + $0x108] sm:$0xff]
        %v709 = vld [vmem:[#allocation9 + $0x110] sm:$0xff]
        %v710 = vld [vmem:[#allocation9 + $0x118] sm:$0xff]
        %v711 = vld [vmem:[#allocation9 + $0x120] sm:$0xff]
        %v712 = vld [vmem:[#allocation9 + $0x128] sm:$0xff]
        %v713 = vld [vmem:[#allocation9 + $0x130] sm:$0xff]
        %v714 = vld [vmem:[#allocation9 + $0x138] sm:$0xff]
        %v715 = vld [vmem:[#allocation9 + $0x140] sm:$0xff]
        %v716 = vld [vmem:[#allocation9 + $0x148] sm:$0xff]
        %v717 = vld [vmem:[#allocation9 + $0x150] sm:$0xff]
        %v718 = vld [vmem:[#allocation9 + $0x158] sm:$0xff]
        %v719 = vld [vmem:[#allocation9 + $0x160] sm:$0xff]
        %v720 = vld [vmem:[#allocation9 + $0x168] sm:$0xff]
        %v721 = vld [vmem:[#allocation9 + $0x170] sm:$0xff]
        %v722 = vld [vmem:[#allocation9 + $0x178] sm:$0xff]
        %723 = vmatpush.msra.mxu0 %v720
        %724 = vmatpush.msra.mxu0 %v717
        %725 = vmatpush.msra.mxu0 %v714
        %726 = vmatpush.msra.mxu0 %v711
        %727 = vmatpush.msra.mxu0 %v708
        %728 = vmatpush.msra.mxu0 %v705
        %729 = vmatpush.msra.mxu0 %v702
        %730 = vmatpush.msra.mxu0 %v699
        %731 = vmatpush.msra.mxu0 %v696
        %732 = vmatpush.msra.mxu0 %v693
        %733 = vmatpush.msra.mxu0 %v690
        %734 = vmatpush.msra.mxu0 %v687
        %735 = vmatpush.msra.mxu0 %v684
        %736 = vmatpush.msra.mxu0 %v681
        %737 = vmatpush.msra.mxu0 %v678
        %738 = vmatpush.msra.mxu0 %v675
        %739 = vmatmul.f32.gmra.mxu0 %v668
        %v740 = vpop.f32.mrf.mxu0
        %v741 = vadd.f32 0.0, %v740
        %742 = vdwg.mxu0
        %743 = vmatpush.msra.mxu0 %v721
        %744 = vmatpush.msra.mxu0 %v718
        %745 = vmatpush.msra.mxu0 %v715
        %746 = vmatpush.msra.mxu0 %v712
        %747 = vmatpush.msra.mxu0 %v709
        %748 = vmatpush.msra.mxu0 %v706
        %749 = vmatpush.msra.mxu0 %v703
        %750 = vmatpush.msra.mxu0 %v700
        %751 = vmatpush.msra.mxu0 %v697
        %752 = vmatpush.msra.mxu0 %v694
        %753 = vmatpush.msra.mxu0 %v691
        %754 = vmatpush.msra.mxu0 %v688
        %755 = vmatpush.msra.mxu0 %v685
        %756 = vmatpush.msra.mxu0 %v682
        %757 = vmatpush.msra.mxu0 %v679
        %758 = vmatpush.msra.mxu0 %v676
        %759 = vmatmul.f32.gmra.mxu0 %v668
        %v760 = vpop.f32.mrf.mxu0
        %v761 = vadd.f32 0.0, %v760
        %762 = vdwg.mxu0
        %763 = vmatpush.msra.mxu0 %v722
        %764 = vmatpush.msra.mxu0 %v719
        %765 = vmatpush.msra.mxu0 %v716
        %766 = vmatpush.msra.mxu0 %v713
        %767 = vmatpush.msra.mxu0 %v710
        %768 = vmatpush.msra.mxu0 %v707
        %769 = vmatpush.msra.mxu0 %v704
        %770 = vmatpush.msra.mxu0 %v701
        %771 = vmatpush.msra.mxu0 %v698
        %772 = vmatpush.msra.mxu0 %v695
        %773 = vmatpush.msra.mxu0 %v692
        %774 = vmatpush.msra.mxu0 %v689
        %775 = vmatpush.msra.mxu0 %v686
        %776 = vmatpush.msra.mxu0 %v683
        %777 = vmatpush.msra.mxu0 %v680
        %778 = vmatpush.msra.mxu0 %v677
        %779 = vmatmul.f32.gmra.mxu0 %v668
        %v780 = vpop.f32.mrf.mxu0
        %v781 = vadd.f32 0.0, %v780
        %782 = vdwg.mxu0
        %v783 = vadd.f32 %v672, %v741
        %v784 = vxor.u32 %v783, 2147483648
        %v785 = vmul.f32 %v784, 1.442695
        %v786 = vpow.pop %v785
        %v787 = vadd.f32 %v786, 1.0
        %v788 = vrcp.pop %v787
        %v789 = vmul.f32 %v787, %v788
        %v790 = vsub.f32 1.0, %v789
        %v791 = vmul.f32 %v788, %v790
        %v792 = vadd.f32 %v788, %v791
        %vm793 = vweird.f32 %v787
        %vm794 = vweird.f32 %v788
        %vm795 = vmor %vm793, %vm794
        %v796 = vsel %vm795, %v788, %v792
        %v797 = vand.u32 2147483647, %v787
        %vm798 = vcmp.eq.f32.partialorder %v797, 8.507059e+37
        %v799 = vand.u32 %v787, 2147483648
        %v800 = vor.u32 1.1754944e-38, %v799
        %v801 = vsel %vm798, %v800, %v796
        %v802 = vmul.f32 1.0, %v801
        %v803 = vadd.f32 %v673, %v761
        %v804 = vxor.u32 %v803, 2147483648
        %v805 = vmul.f32 %v804, 1.442695
        %v806 = vpow.pop %v805
        %v807 = vadd.f32 %v806, 1.0
        %v808 = vrcp.pop %v807
        %v809 = vmul.f32 %v807, %v808
        %v810 = vsub.f32 1.0, %v809
        %v811 = vmul.f32 %v808, %v810
        %v812 = vadd.f32 %v808, %v811
        %vm813 = vweird.f32 %v807
        %vm814 = vweird.f32 %v808
        %vm815 = vmor %vm813, %vm814
        %v816 = vsel %vm815, %v808, %v812
        %v817 = vand.u32 2147483647, %v807
        %vm818 = vcmp.eq.f32.partialorder %v817, 8.507059e+37
        %v819 = vand.u32 %v807, 2147483648
        %v820 = vor.u32 1.1754944e-38, %v819
        %v821 = vsel %vm818, %v820, %v816
        %v822 = vmul.f32 1.0, %v821
        %v823 = vadd.f32 %v781, %v656
        %v824 = vmul.f32 %v802, %v823
        %v825 = vadd.f32 %v674, %v824
        %v826 = vtanh.pop %v825
        %v827 = vsub.f32 1.0, %v822
        %v828 = vmul.f32 %v827, %v826
        %v829 = vmul.f32 %v822, %v668
        %v830 = vadd.f32 %v828, %v829
        %s831 = sadd.s32 %s502, 1
        %v832 = vstv %s831
        %vm833 = vcmp.lt.s32.totalorder %v832, %v501
        %v834 = vsel %vm833, %v830, %v668
        %v835 = vsel %vm833, %v830, 0.0
        %s836 = scalar_lea.vmem %s328, 8 [#allocation10]
        %837 = vst [vmem:[%s836] sm:$0xff] %v835
        %s838 = scalar_lea.vmem [#allocation3], 48
        %v839 = vld [vmem:[%s838] sm:$0xff]
        %v840 = vld [vmem:[%s838 + $0x8] sm:$0xff]
        %v841 = vld [vmem:[%s838 + $0x10] sm:$0xff]
        %v842 = vld [vmem:[#allocation9] sm:$0xff]
        %v843 = vld [vmem:[#allocation9 + $0x8] sm:$0xff]
        %v844 = vld [vmem:[#allocation9 + $0x10] sm:$0xff]
        %v845 = vld [vmem:[#allocation9 + $0x18] sm:$0xff]
        %v846 = vld [vmem:[#allocation9 + $0x20] sm:$0xff]
        %v847 = vld [vmem:[#allocation9 + $0x28] sm:$0xff]
        %v848 = vld [vmem:[#allocation9 + $0x30] sm:$0xff]
        %v849 = vld [vmem:[#allocation9 + $0x38] sm:$0xff]
        %v850 = vld [vmem:[#allocation9 + $0x40] sm:$0xff]
        %v851 = vld [vmem:[#allocation9 + $0x48] sm:$0xff]
        %v852 = vld [vmem:[#allocation9 + $0x50] sm:$0xff]
        %v853 = vld [vmem:[#allocation9 + $0x58] sm:$0xff]
        %v854 = vld [vmem:[#allocation9 + $0x60] sm:$0xff]
        %v855 = vld [vmem:[#allocation9 + $0x68] sm:$0xff]
        %v856 = vld [vmem:[#allocation9 + $0x70] sm:$0xff]
        %v857 = vld [vmem:[#allocation9 + $0x78] sm:$0xff]
        %v858 = vld [vmem:[#allocation9 + $0x80] sm:$0xff]
        %v859 = vld [vmem:[#allocation9 + $0x88] sm:$0xff]
        %v860 = vld [vmem:[#allocation9 + $0x90] sm:$0xff]
        %v861 = vld [vmem:[#allocation9 + $0x98] sm:$0xff]
        %v862 = vld [vmem:[#allocation9 + $0xa0] sm:$0xff]
        %v863 = vld [vmem:[#allocation9 + $0xa8] sm:$0xff]
        %v864 = vld [vmem:[#allocation9 + $0xb0] sm:$0xff]
        %v865 = vld [vmem:[#allocation9 + $0xb8] sm:$0xff]
        %v866 = vld [vmem:[#allocation9 + $0xc0] sm:$0xff]
        %v867 = vld [vmem:[#allocation9 + $0xc8] sm:$0xff]
        %v868 = vld [vmem:[#allocation9 + $0xd0] sm:$0xff]
        %v869 = vld [vmem:[#allocation9 + $0xd8] sm:$0xff]
        %v870 = vld [vmem:[#allocation9 + $0xe0] sm:$0xff]
        %v871 = vld [vmem:[#allocation9 + $0xe8] sm:$0xff]
        %v872 = vld [vmem:[#allocation9 + $0xf0] sm:$0xff]
        %v873 = vld [vmem:[#allocation9 + $0xf8] sm:$0xff]
        %v874 = vld [vmem:[#allocation9 + $0x100] sm:$0xff]
        %v875 = vld [vmem:[#allocation9 + $0x108] sm:$0xff]
        %v876 = vld [vmem:[#allocation9 + $0x110] sm:$0xff]
        %v877 = vld [vmem:[#allocation9 + $0x118] sm:$0xff]
        %v878 = vld [vmem:[#allocation9 + $0x120] sm:$0xff]
        %v879 = vld [vmem:[#allocation9 + $0x128] sm:$0xff]
        %v880 = vld [vmem:[#allocation9 + $0x130] sm:$0xff]
        %v881 = vld [vmem:[#allocation9 + $0x138] sm:$0xff]
        %v882 = vld [vmem:[#allocation9 + $0x140] sm:$0xff]
        %v883 = vld [vmem:[#allocation9 + $0x148] sm:$0xff]
        %v884 = vld [vmem:[#allocation9 + $0x150] sm:$0xff]
        %v885 = vld [vmem:[#allocation9 + $0x158] sm:$0xff]
        %v886 = vld [vmem:[#allocation9 + $0x160] sm:$0xff]
        %v887 = vld [vmem:[#allocation9 + $0x168] sm:$0xff]
        %v888 = vld [vmem:[#allocation9 + $0x170] sm:$0xff]
        %v889 = vld [vmem:[#allocation9 + $0x178] sm:$0xff]
        %890 = vmatpush.msra.mxu0 %v887
        %891 = vmatpush.msra.mxu0 %v884
        %892 = vmatpush.msra.mxu0 %v881
        %893 = vmatpush.msra.mxu0 %v878
        %894 = vmatpush.msra.mxu0 %v875
        %895 = vmatpush.msra.mxu0 %v872
        %896 = vmatpush.msra.mxu0 %v869
        %897 = vmatpush.msra.mxu0 %v866
        %898 = vmatpush.msra.mxu0 %v863
        %899 = vmatpush.msra.mxu0 %v860
        %900 = vmatpush.msra.mxu0 %v857
        %901 = vmatpush.msra.mxu0 %v854
        %902 = vmatpush.msra.mxu0 %v851
        %903 = vmatpush.msra.mxu0 %v848
        %904 = vmatpush.msra.mxu0 %v845
        %905 = vmatpush.msra.mxu0 %v842
        %906 = vmatmul.f32.gmra.mxu0 %v834
        %v907 = vpop.f32.mrf.mxu0
        %v908 = vadd.f32 0.0, %v907
        %909 = vdwg.mxu0
        %910 = vmatpush.msra.mxu0 %v888
        %911 = vmatpush.msra.mxu0 %v885
        %912 = vmatpush.msra.mxu0 %v882
        %913 = vmatpush.msra.mxu0 %v879
        %914 = vmatpush.msra.mxu0 %v876
        %915 = vmatpush.msra.mxu0 %v873
        %916 = vmatpush.msra.mxu0 %v870
        %917 = vmatpush.msra.mxu0 %v867
        %918 = vmatpush.msra.mxu0 %v864
        %919 = vmatpush.msra.mxu0 %v861
        %920 = vmatpush.msra.mxu0 %v858
        %921 = vmatpush.msra.mxu0 %v855
        %922 = vmatpush.msra.mxu0 %v852
        %923 = vmatpush.msra.mxu0 %v849
        %924 = vmatpush.msra.mxu0 %v846
        %925 = vmatpush.msra.mxu0 %v843
        %926 = vmatmul.f32.gmra.mxu0 %v834
        %v927 = vpop.f32.mrf.mxu0
        %v928 = vadd.f32 0.0, %v927
        %929 = vdwg.mxu0
        %930 = vmatpush.msra.mxu0 %v889
        %931 = vmatpush.msra.mxu0 %v886
        %932 = vmatpush.msra.mxu0 %v883
        %933 = vmatpush.msra.mxu0 %v880
        %934 = vmatpush.msra.mxu0 %v877
        %935 = vmatpush.msra.mxu0 %v874
        %936 = vmatpush.msra.mxu0 %v871
        %937 = vmatpush.msra.mxu0 %v868
        %938 = vmatpush.msra.mxu0 %v865
        %939 = vmatpush.msra.mxu0 %v862
        %940 = vmatpush.msra.mxu0 %v859
        %941 = vmatpush.msra.mxu0 %v856
        %942 = vmatpush.msra.mxu0 %v853
        %943 = vmatpush.msra.mxu0 %v850
        %944 = vmatpush.msra.mxu0 %v847
        %945 = vmatpush.msra.mxu0 %v844
        %946 = vmatmul.f32.gmra.mxu0 %v834
        %v947 = vpop.f32.mrf.mxu0
        %v948 = vadd.f32 0.0, %v947
        %949 = vdwg.mxu0
        %v950 = vadd.f32 %v839, %v908
        %v951 = vxor.u32 %v950, 2147483648
        %v952 = vmul.f32 %v951, 1.442695
        %v953 = vpow.pop %v952
        %v954 = vadd.f32 %v953, 1.0
        %v955 = vrcp.pop %v954
        %v956 = vmul.f32 %v954, %v955
        %v957 = vsub.f32 1.0, %v956
        %v958 = vmul.f32 %v955, %v957
        %v959 = vadd.f32 %v955, %v958
        %vm960 = vweird.f32 %v954
        %vm961 = vweird.f32 %v955
        %vm962 = vmor %vm960, %vm961
        %v963 = vsel %vm962, %v955, %v959
        %v964 = vand.u32 2147483647, %v954
        %vm965 = vcmp.eq.f32.partialorder %v964, 8.507059e+37
        %v966 = vand.u32 %v954, 2147483648
        %v967 = vor.u32 1.1754944e-38, %v966
        %v968 = vsel %vm965, %v967, %v963
        %v969 = vmul.f32 1.0, %v968
        %v970 = vadd.f32 %v840, %v928
        %v971 = vxor.u32 %v970, 2147483648
        %v972 = vmul.f32 %v971, 1.442695
        %v973 = vpow.pop %v972
        %v974 = vadd.f32 %v973, 1.0
        %v975 = vrcp.pop %v974
        %v976 = vmul.f32 %v974, %v975
        %v977 = vsub.f32 1.0, %v976
        %v978 = vmul.f32 %v975, %v977
        %v979 = vadd.f32 %v975, %v978
        %vm980 = vweird.f32 %v974
        %vm981 = vweird.f32 %v975
        %vm982 = vmor %vm980, %vm981
        %v983 = vsel %vm982, %v975, %v979
        %v984 = vand.u32 2147483647, %v974
        %vm985 = vcmp.eq.f32.partialorder %v984, 8.507059e+37
        %v986 = vand.u32 %v974, 2147483648
        %v987 = vor.u32 1.1754944e-38, %v986
        %v988 = vsel %vm985, %v987, %v983
        %v989 = vmul.f32 1.0, %v988
        %v990 = vadd.f32 %v948, %v656
        %v991 = vmul.f32 %v969, %v990
        %v992 = vadd.f32 %v841, %v991
        %v993 = vtanh.pop %v992
        %v994 = vsub.f32 1.0, %v989
        %v995 = vmul.f32 %v994, %v993
        %v996 = vmul.f32 %v989, %v834
        %v997 = vadd.f32 %v995, %v996
        %s998 = sadd.s32 %s502, 2
        %v999 = vstv %s998
        %vm1000 = vcmp.lt.s32.totalorder %v999, %v501
        %v1001 = vsel %vm1000, %v997, %v834
        %v1002 = vsel %vm1000, %v997, 0.0
        %s1003 = scalar_lea.vmem %s328, 16 [#allocation10]
        %1004 = vst [vmem:[%s1003] sm:$0xff] %v1002
        %s1005 = scalar_lea.vmem [#allocation3], 72
        %v1006 = vld [vmem:[%s1005] sm:$0xff]
        %v1007 = vld [vmem:[%s1005 + $0x8] sm:$0xff]
        %v1008 = vld [vmem:[%s1005 + $0x10] sm:$0xff]
        %v1009 = vld [vmem:[#allocation9] sm:$0xff]
        %v1010 = vld [vmem:[#allocation9 + $0x8] sm:$0xff]
        %v1011 = vld [vmem:[#allocation9 + $0x10] sm:$0xff]
        %v1012 = vld [vmem:[#allocation9 + $0x18] sm:$0xff]
        %v1013 = vld [vmem:[#allocation9 + $0x20] sm:$0xff]
        %v1014 = vld [vmem:[#allocation9 + $0x28] sm:$0xff]
        %v1015 = vld [vmem:[#allocation9 + $0x30] sm:$0xff]
        %v1016 = vld [vmem:[#allocation9 + $0x38] sm:$0xff]
        %v1017 = vld [vmem:[#allocation9 + $0x40] sm:$0xff]
        %v1018 = vld [vmem:[#allocation9 + $0x48] sm:$0xff]
        %v1019 = vld [vmem:[#allocation9 + $0x50] sm:$0xff]
        %v1020 = vld [vmem:[#allocation9 + $0x58] sm:$0xff]
        %v1021 = vld [vmem:[#allocation9 + $0x60] sm:$0xff]
        %v1022 = vld [vmem:[#allocation9 + $0x68] sm:$0xff]
        %v1023 = vld [vmem:[#allocation9 + $0x70] sm:$0xff]
        %v1024 = vld [vmem:[#allocation9 + $0x78] sm:$0xff]
        %v1025 = vld [vmem:[#allocation9 + $0x80] sm:$0xff]
        %v1026 = vld [vmem:[#allocation9 + $0x88] sm:$0xff]
        %v1027 = vld [vmem:[#allocation9 + $0x90] sm:$0xff]
        %v1028 = vld [vmem:[#allocation9 + $0x98] sm:$0xff]
        %v1029 = vld [vmem:[#allocation9 + $0xa0] sm:$0xff]
        %v1030 = vld [vmem:[#allocation9 + $0xa8] sm:$0xff]
        %v1031 = vld [vmem:[#allocation9 + $0xb0] sm:$0xff]
        %v1032 = vld [vmem:[#allocation9 + $0xb8] sm:$0xff]
        %v1033 = vld [vmem:[#allocation9 + $0xc0] sm:$0xff]
        %v1034 = vld [vmem:[#allocation9 + $0xc8] sm:$0xff]
        %v1035 = vld [vmem:[#allocation9 + $0xd0] sm:$0xff]
        %v1036 = vld [vmem:[#allocation9 + $0xd8] sm:$0xff]
        %v1037 = vld [vmem:[#allocation9 + $0xe0] sm:$0xff]
        %v1038 = vld [vmem:[#allocation9 + $0xe8] sm:$0xff]
        %v1039 = vld [vmem:[#allocation9 + $0xf0] sm:$0xff]
        %v1040 = vld [vmem:[#allocation9 + $0xf8] sm:$0xff]
        %v1041 = vld [vmem:[#allocation9 + $0x100] sm:$0xff]
        %v1042 = vld [vmem:[#allocation9 + $0x108] sm:$0xff]
        %v1043 = vld [vmem:[#allocation9 + $0x110] sm:$0xff]
        %v1044 = vld [vmem:[#allocation9 + $0x118] sm:$0xff]
        %v1045 = vld [vmem:[#allocation9 + $0x120] sm:$0xff]
        %v1046 = vld [vmem:[#allocation9 + $0x128] sm:$0xff]
        %v1047 = vld [vmem:[#allocation9 + $0x130] sm:$0xff]
        %v1048 = vld [vmem:[#allocation9 + $0x138] sm:$0xff]
        %v1049 = vld [vmem:[#allocation9 + $0x140] sm:$0xff]
        %v1050 = vld [vmem:[#allocation9 + $0x148] sm:$0xff]
        %v1051 = vld [vmem:[#allocation9 + $0x150] sm:$0xff]
        %v1052 = vld [vmem:[#allocation9 + $0x158] sm:$0xff]
        %v1053 = vld [vmem:[#allocation9 + $0x160] sm:$0xff]
        %v1054 = vld [vmem:[#allocation9 + $0x168] sm:$0xff]
        %v1055 = vld [vmem:[#allocation9 + $0x170] sm:$0xff]
        %v1056 = vld [vmem:[#allocation9 + $0x178] sm:$0xff]
        %1057 = vmatpush.msra.mxu0 %v1054
        %1058 = vmatpush.msra.mxu0 %v1051
        %1059 = vmatpush.msra.mxu0 %v1048
        %1060 = vmatpush.msra.mxu0 %v1045
        %1061 = vmatpush.msra.mxu0 %v1042
        %1062 = vmatpush.msra.mxu0 %v1039
        %1063 = vmatpush.msra.mxu0 %v1036
        %1064 = vmatpush.msra.mxu0 %v1033
        %1065 = vmatpush.msra.mxu0 %v1030
        %1066 = vmatpush.msra.mxu0 %v1027
        %1067 = vmatpush.msra.mxu0 %v1024
        %1068 = vmatpush.msra.mxu0 %v1021
        %1069 = vmatpush.msra.mxu0 %v1018
        %1070 = vmatpush.msra.mxu0 %v1015
        %1071 = vmatpush.msra.mxu0 %v1012
        %1072 = vmatpush.msra.mxu0 %v1009
        %1073 = vmatmul.f32.gmra.mxu0 %v1001
        %v1074 = vpop.f32.mrf.mxu0
        %v1075 = vadd.f32 0.0, %v1074
        %1076 = vdwg.mxu0
        %1077 = vmatpush.msra.mxu0 %v1055
        %1078 = vmatpush.msra.mxu0 %v1052
        %1079 = vmatpush.msra.mxu0 %v1049
        %1080 = vmatpush.msra.mxu0 %v1046
        %1081 = vmatpush.msra.mxu0 %v1043
        %1082 = vmatpush.msra.mxu0 %v1040
        %1083 = vmatpush.msra.mxu0 %v1037
        %1084 = vmatpush.msra.mxu0 %v1034
        %1085 = vmatpush.msra.mxu0 %v1031
        %1086 = vmatpush.msra.mxu0 %v1028
        %1087 = vmatpush.msra.mxu0 %v1025
        %1088 = vmatpush.msra.mxu0 %v1022
        %1089 = vmatpush.msra.mxu0 %v1019
        %1090 = vmatpush.msra.mxu0 %v1016
        %1091 = vmatpush.msra.mxu0 %v1013
        %1092 = vmatpush.msra.mxu0 %v1010
        %1093 = vmatmul.f32.gmra.mxu0 %v1001
        %v1094 = vpop.f32.mrf.mxu0
        %v1095 = vadd.f32 0.0, %v1094
        %1096 = vdwg.mxu0
        %1097 = vmatpush.msra.mxu0 %v1056
        %1098 = vmatpush.msra.mxu0 %v1053
        %1099 = vmatpush.msra.mxu0 %v1050
        %1100 = vmatpush.msra.mxu0 %v1047
        %1101 = vmatpush.msra.mxu0 %v1044
        %1102 = vmatpush.msra.mxu0 %v1041
        %1103 = vmatpush.msra.mxu0 %v1038
        %1104 = vmatpush.msra.mxu0 %v1035
        %1105 = vmatpush.msra.mxu0 %v1032
        %1106 = vmatpush.msra.mxu0 %v1029
        %1107 = vmatpush.msra.mxu0 %v1026
        %1108 = vmatpush.msra.mxu0 %v1023
        %1109 = vmatpush.msra.mxu0 %v1020
        %1110 = vmatpush.msra.mxu0 %v1017
        %1111 = vmatpush.msra.mxu0 %v1014
        %1112 = vmatpush.msra.mxu0 %v1011
        %1113 = vmatmul.f32.gmra.mxu0 %v1001
        %v1114 = vpop.f32.mrf.mxu0
        %v1115 = vadd.f32 0.0, %v1114
        %1116 = vdwg.mxu0
        %v1117 = vadd.f32 %v1006, %v1075
        %v1118 = vxor.u32 %v1117, 2147483648
        %v1119 = vmul.f32 %v1118, 1.442695
        %v1120 = vpow.pop %v1119
        %v1121 = vadd.f32 %v1120, 1.0
        %v1122 = vrcp.pop %v1121
        %v1123 = vmul.f32 %v1121, %v1122
        %v1124 = vsub.f32 1.0, %v1123
        %v1125 = vmul.f32 %v1122, %v1124
        %v1126 = vadd.f32 %v1122, %v1125
        %vm1127 = vweird.f32 %v1121
        %vm1128 = vweird.f32 %v1122
        %vm1129 = vmor %vm1127, %vm1128
        %v1130 = vsel %vm1129, %v1122, %v1126
        %v1131 = vand.u32 2147483647, %v1121
        %vm1132 = vcmp.eq.f32.partialorder %v1131, 8.507059e+37
        %v1133 = vand.u32 %v1121, 2147483648
        %v1134 = vor.u32 1.1754944e-38, %v1133
        %v1135 = vsel %vm1132, %v1134, %v1130
        %v1136 = vmul.f32 1.0, %v1135
        %v1137 = vadd.f32 %v1007, %v1095
        %v1138 = vxor.u32 %v1137, 2147483648
        %v1139 = vmul.f32 %v1138, 1.442695
        %v1140 = vpow.pop %v1139
        %v1141 = vadd.f32 %v1140, 1.0
        %v1142 = vrcp.pop %v1141
        %v1143 = vmul.f32 %v1141, %v1142
        %v1144 = vsub.f32 1.0, %v1143
        %v1145 = vmul.f32 %v1142, %v1144
        %v1146 = vadd.f32 %v1142, %v1145
        %vm1147 = vweird.f32 %v1141
        %vm1148 = vweird.f32 %v1142
        %vm1149 = vmor %vm1147, %vm1148
        %v1150 = vsel %vm1149, %v1142, %v1146
        %v1151 = vand.u32 2147483647, %v1141
        %vm1152 = vcmp.eq.f32.partialorder %v1151, 8.507059e+37
        %v1153 = vand.u32 %v1141, 2147483648
        %v1154 = vor.u32 1.1754944e-38, %v1153
        %v1155 = vsel %vm1152, %v1154, %v1150
        %v1156 = vmul.f32 1.0, %v1155
        %v1157 = vadd.f32 %v1115, %v656
        %v1158 = vmul.f32 %v1136, %v1157
        %v1159 = vadd.f32 %v1008, %v1158
        %v1160 = vtanh.pop %v1159
        %v1161 = vsub.f32 1.0, %v1156
        %v1162 = vmul.f32 %v1161, %v1160
        %v1163 = vmul.f32 %v1156, %v1001
        %v1164 = vadd.f32 %v1162, %v1163
        %s1165 = sadd.s32 %s502, 3
        %v1166 = vstv %s1165
        %vm1167 = vcmp.lt.s32.totalorder %v1166, %v501
        %v1168 = vsel %vm1167, %v1164, %v1001
        %v1169 = vsel %vm1167, %v1164, 0.0
        %s1170 = scalar_lea.vmem %s328, 24 [#allocation10]
        %1171 = vst [vmem:[%s1170] sm:$0xff] %v1169
        %1172 = vst [vmem:[#allocation2] sm:$0xff] %v1168
        %1173 = vst [vmem:[#allocation11] sm:$0xff] %v1168
        %s1174 = sand.u32 %s166, 1
        %s1175 = scalar_lea.sflag [#allocation6], %s1174
        %s1176 = sand.u32 %s166, 1
        %s1177 = smul.addr %s1176, 32
        %s1178 = scalar_lea.vmem [#allocation10], %s1177
        // Predicated region
        $region61: #{tpu_custom_call.1} parent=43 // pred_check
          %p1179 = pneg %p176
        $region62: #{tpu_custom_call.1} parent=43 // pred_check_branch
          %1181 = sbr.rel (%p1179) target = $region64
        $region63: #{tpu_custom_call.1} parent=43 // pred_region
          %s1182 = smul.u32 4, %s27
          %1184 = vsyncadd %s1175, 0
          %s1185 = smul.addr %s1182, 8
          %s1186 = scalar_lea.hbm %s6, %s1185
          %s1187 = sshll.u32 %s1178, 4
          %s1188 = int_to_ptr.vmem [resolvable:$true] %s1187
          %s1189 = sshll.u32 %s1186, 4
          %s1190 = int_to_ptr.hbm [resolvable:$true] %s1189
          %1195 = dma.vmem_to_hbm [thread:$0]  %s1188, 512, %s1190, %s1175, 128, 128, 8
        $region64: #{tpu_custom_call.1} parent=43 // pred_fallthru
          _
        // Predicated region
        $region65: #{tpu_custom_call.1} parent=43 // pred_check
          %p1196 = pneg %p197
        $region66: #{tpu_custom_call.1} parent=43 // pred_check_branch
          %1198 = sbr.rel (%p1196) target = $region68
        $region67: #{tpu_custom_call.1} parent=43 // pred_region
          %1200 = vsyncadd [#allocation12], 0
          %s1202 = sshll.u32 [#allocation11], 4
          %s1203 = int_to_ptr.vmem [resolvable:$true] %s1202
          %s1204 = sshll.u32 %s7, 4
          %s1205 = int_to_ptr.hbm [resolvable:$true] %s1204
          %1207 = dma.vmem_to_hbm [thread:$0]  %s1203, 128, %s1205, [#allocation12]
        $region68: #{tpu_custom_call.1} parent=43 // pred_fallthru
          _
        // Predicated region
        $region69: #{tpu_custom_call.1} parent=43 // pred_check
          %p1208 = pneg %p197
        $region70: #{tpu_custom_call.1} parent=43 // pred_check_branch
          %1210 = sbr.rel (%p1208) target = $region72
        $region71: #{tpu_custom_call.1} parent=43 // pred_region
          %1212 = dma.done [#allocation12], 128
        $region72: #{tpu_custom_call.1} parent=43 // pred_fallthru
          _
      $region44: #{tpu_custom_call.1} parent=5 // pred_fallthru
        _
      %p1213 = scmp.le.s32.totalorder 2, %s22
      // Predicated region
      $region73: #{tpu_custom_call.1} parent=5 // pred_check
        %p1214 = pneg %p1213
      $region74: #{tpu_custom_call.1} parent=5 // pred_check_branch
        %1216 = sbr.rel (%p1214) target = $region76
      $region75: #{tpu_custom_call.1} parent=5 // pred_region
        %s1217 = ssub.s32 %s22, 2
        // Predicated region
        $region77: #{tpu_custom_call.1} parent=75 // pred_check
          %p1218 = pneg %p182
        $region78: #{tpu_custom_call.1} parent=75 // pred_check_branch
          %1220 = sbr.rel (%p1218) target = $region80
        $region79: #{tpu_custom_call.1} parent=75 // pred_region
          %s1221 = sand.u32 %s167, 1
          %s1222 = scalar_lea.sflag [#allocation6], %s1221
          %s1223 = sand.u32 %s167, 1
          %s1224 = smul.addr %s1223, 32
          %s1225 = scalar_lea.vmem [#allocation10], %s1224
          %1227 = dma.done %s1222, 512
        $region80: #{tpu_custom_call.1} parent=75 // pred_fallthru
          _
      $region76: #{tpu_custom_call.1} parent=5 // pred_fallthru
        _
    $region6: #{tpu_custom_call.1} parent=1 // loop_footer
      %s26 = sadd.s32 1, %s22
    $region7: #{tpu_custom_call.1} parent=1 // loop_footer_branch
      %21 = sbr.rel target = $region3
    $region8: #{tpu_custom_call.1} parent=1 // loop_exit
      _
    %1228 = vsyncpa [#allocation5], 1
    %s1229 = scalar_lea.sflag [#allocation5], 1
    %1230 = vsyncpa %s1229, 1
    %1231 = vsyncpa [#allocation8], 1
    %1232 = vsyncpa [#allocation6], 1
    %s1233 = scalar_lea.sflag [#allocation6], 1
    %1234 = vsyncpa %s1233, 1
    %1235 = vsyncpa [#allocation12], 1

</llo_original>
